<compile_context>
chip_gen: v5e
topology: v5e:2x2
jax: 0.10.0
libtpu: 0.0.40
codegen_flags: <defaults>
</compile_context>

<pallas_src>
import numpy as np
import jax
import jax.numpy as jnp
from jax.experimental import pallas as pl
from jax.experimental.pallas import tpu as pltpu

NEG_SLOPE = 0.01   # nn.LeakyReLU(negative_slope=0.01)
EPS = 1e-5         # nn.BatchNorm3d default eps

# f32 keeps exact parity with the f32 reference.  Flip to jnp.bfloat16 on v6e/v7x for
# ~2x MXU rate and half the patch-scratch traffic (loosen tolerance to ~2e-2 if so).
MATMUL_DTYPE = jnp.float32


# ----------------------------------------------------------------------------
# Fused BasicBlock3D kernel (one batch element per grid step)
# ----------------------------------------------------------------------------
def _make_block_kernel(D, H, W, C, Cout):
    HW = H * W
    DHW = D * HW
    # Tap order (kd, kh, kw) matches the (3,3,3,Cin,Cout) -> (27*Cin, Cout) weight
    # reshape: patch row = ((kd*3+kh)*3+kw)*C + ci.
    offs = [(kd - 1) * HW + (kh - 1) * W + (kw - 1)
            for kd in range(3) for kh in range(3) for kw in range(3)]

    def fill_patches(act, patch_ref):
        # act: (C, DHW) f32, lane-dense.  Each tap is one XLU lane rotation; wrapped /
        # out-of-bounds positions are zeroed later via the precomputed boundary mask.
        for t, off in enumerate(offs):
            shifted = act if off == 0 else pltpu.roll(act, shift=(-off) % DHW, axis=1)
            patch_ref[t * C:(t + 1) * C, :] = shifted

    def kernel(x_ref, s1_ref, b1_ref, s2_ref, b2_ref, w1t_ref, w2t_ref,
               maskc_ref, o_ref, patch_ref):
        x = x_ref[0].astype(jnp.float32)               # (C, DHW), lane-dense
        mask = maskc_ref[...]                          # (27C, DHW), 0/1 f32

        # --- BN1 (folded, eval-mode) + LeakyReLU: (C,1) lane-broadcast FMA in f32 ---
        h = x * s1_ref[...] + b1_ref[...]
        h = jnp.where(h >= 0, h, NEG_SLOPE * h)

        # --- conv1: transposed matmul W1^T (Cout, 27C) @ patches (27C, DHW) ---------
        fill_patches(h, patch_ref)
        p1 = (patch_ref[...] * mask).astype(MATMUL_DTYPE)
        g = jnp.dot(w1t_ref[...], p1, preferred_element_type=jnp.float32)  # (Cout, DHW)

        # --- BN2 + LeakyReLU ---------------------------------------------------------
        g = g * s2_ref[...] + b2_ref[...]
        g = jnp.where(g >= 0, g, NEG_SLOPE * g)

        # --- conv2 (reuses the same patch scratch; every row is rewritten) ------------
        fill_patches(g, patch_ref)
        p2 = (patch_ref[...] * mask).astype(MATMUL_DTYPE)
        out = jnp.dot(w2t_ref[...], p2, preferred_element_type=jnp.float32)

        # --- residual add + single lane-dense store/cast ------------------------------
        o_ref[0] = (out + x).astype(o_ref.dtype)

    return kernel


def _boundary_mask(D, H, W, C):
    """(27*C, DHW) f32 mask: 1 where tap (kd,kh,kw) stays inside the volume, else 0."""
    dd, hh, ww = np.meshgrid(np.arange(D), np.arange(H), np.arange(W), indexing="ij")
    rows = []
    for kd in range(3):
        for kh in range(3):
            for kw in range(3):
                valid = ((dd + kd - 1 >= 0) & (dd + kd - 1 < D) &
                         (hh + kh - 1 >= 0) & (hh + kh - 1 < H) &
                         (ww + kw - 1 >= 0) & (ww + kw - 1 < W))
                rows.append(valid.reshape(-1))
    mask27 = np.stack(rows, axis=0).astype(np.float32)        # (27, DHW)
    return jnp.asarray(np.repeat(mask27, C, axis=0))          # (27*C, DHW)


def basic_block3d_forward(x, p):
    """x: (N, C, D, H, W) channels-first (PyTorch NCDHW).  stride=1, downsample=None."""
    N, C, D, H, W = x.shape
    Cout = p["conv1_w"].shape[-1]
    assert C == Cout, "identity residual (stride=1, no downsample) needs Cin == Cout"
    DHW = D * H * W
    f32 = jnp.float32

    # Fold eval-mode BN into per-channel scale/shift; (C, 1) => lane-broadcast in-kernel.
    inv1 = 1.0 / jnp.sqrt(p["bn1_var"].astype(f32) + EPS)
    sc1 = p["bn1_gamma"].astype(f32) * inv1
    s1 = sc1.reshape(C, 1)
    b1 = (p["bn1_beta"].astype(f32) - p["bn1_mean"].astype(f32) * sc1).reshape(C, 1)
    inv2 = 1.0 / jnp.sqrt(p["bn2_var"].astype(f32) + EPS)
    sc2 = p["bn2_gamma"].astype(f32) * inv2
    s2 = sc2.reshape(Cout, 1)
    b2 = (p["bn2_beta"].astype(f32) - p["bn2_mean"].astype(f32) * sc2).reshape(Cout, 1)

    # Pack conv weights (3,3,3,Cin,Cout) -> transposed (Cout, 27*Cin) for the
    # lane-dense out^T = W^T @ patches^T matmul.
    w1t = p["conv1_w"].astype(MATMUL_DTYPE).reshape(27 * C, Cout).T
    w2t = p["conv2_w"].astype(MATMUL_DTYPE).reshape(27 * Cout, Cout).T

    maskc = _boundary_mask(D, H, W, C)                 # (27C, DHW) f32, hoisted

    x2 = x.reshape(N, C, DHW)                          # lane axis = DHW (lane-dense)

    kernel = _make_block_kernel(D, H, W, C, Cout)
    # TODO(synk): for production volumes (esp. v7x's 64 MiB VMEM) add a spatial tile
    #             grid axis over D (2-plane halo for the two stacked 3^3 convs) so the
    #             (27C, tile) patch scratch stays bounded; one whole volume per batch
    #             element fits easily at this size.
    out = pl.pallas_call(
        kernel,
        out_shape=jax.ShapeDtypeStruct((N, Cout, DHW), x.dtype),
        grid_spec=pltpu.PrefetchScalarGridSpec(
            num_scalar_prefetch=0,
            grid=(N,),
            in_specs=[
                pl.BlockSpec((1, C, DHW), lambda n: (n, 0, 0)),
                pl.BlockSpec((C, 1), lambda n: (0, 0)),
                pl.BlockSpec((C, 1), lambda n: (0, 0)),
                pl.BlockSpec((Cout, 1), lambda n: (0, 0)),
                pl.BlockSpec((Cout, 1), lambda n: (0, 0)),
                pl.BlockSpec((Cout, 27 * C), lambda n: (0, 0)),
                pl.BlockSpec((Cout, 27 * Cout), lambda n: (0, 0)),
                pl.BlockSpec((27 * C, DHW), lambda n: (0, 0)),
            ],
            out_specs=pl.BlockSpec((1, Cout, DHW), lambda n: (n, 0, 0)),
            scratch_shapes=[pltpu.VMEM((27 * C, DHW), jnp.float32)],
        ),
        compiler_params=pltpu.CompilerParams(
            dimension_semantics=("parallel",),
        ),
    )(x2, s1, b1, s2, b2, w1t, w2t, maskc)
    return out.reshape(N, Cout, D, H, W)


# ----------------------------------------------------------------------------
# Pure-JAX reference (for correctness check), NCDHW like PyTorch
# ----------------------------------------------------------------------------
def reference_forward(x, p):
    def bn(h, g, b, m, v):
        sh = (1, -1, 1, 1, 1)
        return (h - m.reshape(sh)) / jnp.sqrt(v.reshape(sh) + EPS) * g.reshape(sh) \
            + b.reshape(sh)

    def lrelu(h):
        return jnp.where(h >= 0, h, NEG_SLOPE * h)

    dn = ("NCDHW", "DHWIO", "NCDHW")
    h = lrelu(bn(x, p["bn1_gamma"], p["bn1_beta"], p["bn1_mean"], p["bn1_var"]))
    h = jax.lax.conv_general_dilated(h, p["conv1_w"], (1, 1, 1), "SAME",
                                     dimension_numbers=dn)
    h = lrelu(bn(h, p["bn2_gamma"], p["bn2_beta"], p["bn2_mean"], p["bn2_var"]))
    h = jax.lax.conv_general_dilated(h, p["conv2_w"], (1, 1, 1), "SAME",
                                     dimension_numbers=dn)
    return h + x


# ----------------------------------------------------------------------------
# Deterministic parameter init + smoke test
# ----------------------------------------------------------------------------
def make_params(key, cin, cout):
    ks = jax.random.split(key, 10)
    fan_in = cin * 27
    return {
        "bn1_gamma": jax.random.uniform(ks[0], (cin,), jnp.float32, 0.5, 1.5),
        "bn1_beta": 0.1 * jax.random.normal(ks[1], (cin,), jnp.float32),
        "bn1_mean": 0.1 * jax.random.normal(ks[2], (cin,), jnp.float32),
        "bn1_var": jax.random.uniform(ks[3], (cin,), jnp.float32, 0.5, 1.5),
        "bn2_gamma": jax.random.uniform(ks[4], (cout,), jnp.float32, 0.5, 1.5),
        "bn2_beta": 0.1 * jax.random.normal(ks[5], (cout,), jnp.float32),
        "bn2_mean": 0.1 * jax.random.normal(ks[6], (cout,), jnp.float32),
        "bn2_var": jax.random.uniform(ks[7], (cout,), jnp.float32, 0.5, 1.5),
        # Conv weights in DHWIO layout (3, 3, 3, Cin, Cout).
        "conv1_w": (jax.random.normal(ks[8], (3, 3, 3, cin, cout), jnp.float32)
                    / jnp.sqrt(fan_in)),
        "conv2_w": (jax.random.normal(ks[9], (3, 3, 3, cout, cout), jnp.float32)
                    / jnp.sqrt(cout * 27)),
    }


if __name__ == "__main__":
    key = jax.random.PRNGKey(0)
    kx, kp = jax.random.split(key)

    N, C, D, H, W = 2, 4, 4, 8, 8           # in_channels == out_channels, stride=1
    x = jax.random.normal(kx, (N, C, D, H, W), jnp.float32)   # NCDHW (PyTorch layout)
    params = make_params(kp, C, C)

    out = jax.block_until_ready(basic_block3d_forward(x, params))
    ref = jax.block_until_ready(reference_forward(x, params))

    assert out.shape == (N, C, D, H, W), out.shape
    max_err = float(jnp.max(jnp.abs(out - ref)))
    assert jnp.allclose(out, ref, atol=2e-4, rtol=2e-4), max_err
    print("KERNEL_OK")
</pallas_src>

<mosaic_0001>
module attributes {stable_mosaic.version = 11 : i64} {
  func.func @kernel(%arg0: i32, %arg1: memref<1x4x256xf32, #tpu.memory_space<vmem>>, %arg2: memref<4x1xf32, #tpu.memory_space<vmem>>, %arg3: memref<4x1xf32, #tpu.memory_space<vmem>>, %arg4: memref<4x1xf32, #tpu.memory_space<vmem>>, %arg5: memref<4x1xf32, #tpu.memory_space<vmem>>, %arg6: memref<4x108xf32, #tpu.memory_space<vmem>>, %arg7: memref<4x108xf32, #tpu.memory_space<vmem>>, %arg8: memref<108x256xf32, #tpu.memory_space<vmem>>, %arg9: memref<1x4x256xf32, #tpu.memory_space<vmem>>, %arg10: memref<108x256xf32, #tpu.memory_space<vmem>>) attributes {dimension_semantics = [#tpu.dimension_semantics<parallel>], iteration_bounds = array<i64: 2>, scalar_prefetch = 0 : i64, scratch_operands = 1 : i64, tpu.core_type = #tpu.core_type<tc>, window_params = [{transform_indices = @transform_0, window_bounds = array<i64: 1, 4, 256>}, {pipeline_mode = #tpu.pipeline_mode<synchronous>, transform_indices = @transform_1, window_bounds = array<i64: 4, 1>}, {pipeline_mode = #tpu.pipeline_mode<synchronous>, transform_indices = @transform_2, window_bounds = array<i64: 4, 1>}, {pipeline_mode = #tpu.pipeline_mode<synchronous>, transform_indices = @transform_3, window_bounds = array<i64: 4, 1>}, {pipeline_mode = #tpu.pipeline_mode<synchronous>, transform_indices = @transform_4, window_bounds = array<i64: 4, 1>}, {pipeline_mode = #tpu.pipeline_mode<synchronous>, transform_indices = @transform_5, window_bounds = array<i64: 4, 108>}, {pipeline_mode = #tpu.pipeline_mode<synchronous>, transform_indices = @transform_6, window_bounds = array<i64: 4, 108>}, {pipeline_mode = #tpu.pipeline_mode<synchronous>, transform_indices = @transform_7, window_bounds = array<i64: 108, 256>}, {transform_indices = @transform_8, window_bounds = array<i64: 1, 4, 256>}]} {
    %c0 = arith.constant 0 : index
    %c0_0 = arith.constant 0 : index
    %c0_1 = arith.constant 0 : index
    %0 = vector.load %arg1[%c0, %c0_0, %c0_1] : memref<1x4x256xf32, #tpu.memory_space<vmem>>, vector<1x4x256xf32>
    %1 = vector.shape_cast %0 : vector<1x4x256xf32> to vector<4x256xf32>
    %c0_2 = arith.constant 0 : index
    %c0_3 = arith.constant 0 : index
    %2 = vector.load %arg8[%c0_2, %c0_3] : memref<108x256xf32, #tpu.memory_space<vmem>>, vector<108x256xf32>
    %c0_4 = arith.constant 0 : index
    %c0_5 = arith.constant 0 : index
    %3 = vector.load %arg2[%c0_4, %c0_5] : memref<4x1xf32, #tpu.memory_space<vmem>>, vector<4x1xf32>
    %4 = vector.broadcast %3 : vector<4x1xf32> to vector<4x256xf32>
    %5 = arith.mulf %1, %4 : vector<4x256xf32>
    %c0_6 = arith.constant 0 : index
    %c0_7 = arith.constant 0 : index
    %6 = vector.load %arg3[%c0_6, %c0_7] : memref<4x1xf32, #tpu.memory_space<vmem>>, vector<4x1xf32>
    %7 = vector.broadcast %6 : vector<4x1xf32> to vector<4x256xf32>
    %8 = arith.addf %5, %7 : vector<4x256xf32>
    %cst = arith.constant 0.000000e+00 : f32
    %9 = vector.broadcast %cst : f32 to vector<4x256xf32>
    %10 = arith.cmpf oge, %8, %9 : vector<4x256xf32>
    %cst_8 = arith.constant 0.00999999977 : f32
    %11 = vector.broadcast %cst_8 : f32 to vector<4x256xf32>
    %12 = arith.mulf %11, %8 : vector<4x256xf32>
    %13 = arith.select %10, %8, %12 : vector<4x256xi1>, vector<4x256xf32>
    %c73_i32 = arith.constant 73 : i32
    %14 = tpu.dynamic_rotate %13 by %c73_i32 dim 1 : vector<4x256xf32>, i32 -> vector<4x256xf32>
    %c0_9 = arith.constant 0 : index
    %c0_10 = arith.constant 0 : index
    %15 = vector.load %arg10[%c0_9, %c0_10] : memref<108x256xf32, #tpu.memory_space<vmem>>, vector<4x256xf32>
    tpu.vector_store %arg10[%c0_9, %c0_10], %14 {strides = array<i32>} : memref<108x256xf32, #tpu.memory_space<vmem>>, vector<4x256xf32>,
    %c72_i32 = arith.constant 72 : i32
    %16 = tpu.dynamic_rotate %13 by %c72_i32 dim 1 : vector<4x256xf32>, i32 -> vector<4x256xf32>
    %c4 = arith.constant 4 : index
    %c0_11 = arith.constant 0 : index
    %17 = vector.load %arg10[%c4, %c0_11] : memref<108x256xf32, #tpu.memory_space<vmem>>, vector<4x256xf32>
    tpu.vector_store %arg10[%c4, %c0_11], %16 {strides = array<i32>} : memref<108x256xf32, #tpu.memory_space<vmem>>, vector<4x256xf32>,
    %c71_i32 = arith.constant 71 : i32
    %18 = tpu.dynamic_rotate %13 by %c71_i32 dim 1 : vector<4x256xf32>, i32 -> vector<4x256xf32>
    %c8 = arith.constant 8 : index
    %c0_12 = arith.constant 0 : index
    %19 = vector.load %arg10[%c8, %c0_12] : memref<108x256xf32, #tpu.memory_space<vmem>>, vector<4x256xf32>
    tpu.vector_store %arg10[%c8, %c0_12], %18 {strides = array<i32>} : memref<108x256xf32, #tpu.memory_space<vmem>>, vector<4x256xf32>,
    %c65_i32 = arith.constant 65 : i32
    %20 = tpu.dynamic_rotate %13 by %c65_i32 dim 1 : vector<4x256xf32>, i32 -> vector<4x256xf32>
    %c12 = arith.constant 12 : index
    %c0_13 = arith.constant 0 : index
    %21 = vector.load %arg10[%c12, %c0_13] : memref<108x256xf32, #tpu.memory_space<vmem>>, vector<4x256xf32>
    tpu.vector_store %arg10[%c12, %c0_13], %20 {strides = array<i32>} : memref<108x256xf32, #tpu.memory_space<vmem>>, vector<4x256xf32>,
    %c64_i32 = arith.constant 64 : i32
    %22 = tpu.dynamic_rotate %13 by %c64_i32 dim 1 : vector<4x256xf32>, i32 -> vector<4x256xf32>
    %c16 = arith.constant 16 : index
    %c0_14 = arith.constant 0 : index
    %23 = vector.load %arg10[%c16, %c0_14] : memref<108x256xf32, #tpu.memory_space<vmem>>, vector<4x256xf32>
    tpu.vector_store %arg10[%c16, %c0_14], %22 {strides = array<i32>} : memref<108x256xf32, #tpu.memory_space<vmem>>, vector<4x256xf32>,
    %c63_i32 = arith.constant 63 : i32
    %24 = tpu.dynamic_rotate %13 by %c63_i32 dim 1 : vector<4x256xf32>, i32 -> vector<4x256xf32>
    %c20 = arith.constant 20 : index
    %c0_15 = arith.constant 0 : index
    %25 = vector.load %arg10[%c20, %c0_15] : memref<108x256xf32, #tpu.memory_space<vmem>>, vector<4x256xf32>
    tpu.vector_store %arg10[%c20, %c0_15], %24 {strides = array<i32>} : memref<108x256xf32, #tpu.memory_space<vmem>>, vector<4x256xf32>,
    %c57_i32 = arith.constant 57 : i32
    %26 = tpu.dynamic_rotate %13 by %c57_i32 dim 1 : vector<4x256xf32>, i32 -> vector<4x256xf32>
    %c24 = arith.constant 24 : index
    %c0_16 = arith.constant 0 : index
    %27 = vector.load %arg10[%c24, %c0_16] : memref<108x256xf32, #tpu.memory_space<vmem>>, vector<4x256xf32>
    tpu.vector_store %arg10[%c24, %c0_16], %26 {strides = array<i32>} : memref<108x256xf32, #tpu.memory_space<vmem>>, vector<4x256xf32>,
    %c56_i32 = arith.constant 56 : i32
    %28 = tpu.dynamic_rotate %13 by %c56_i32 dim 1 : vector<4x256xf32>, i32 -> vector<4x256xf32>
    %c28 = arith.constant 28 : index
    %c0_17 = arith.constant 0 : index
    %29 = vector.load %arg10[%c28, %c0_17] : memref<108x256xf32, #tpu.memory_space<vmem>>, vector<4x256xf32>
    tpu.vector_store %arg10[%c28, %c0_17], %28 {strides = array<i32>} : memref<108x256xf32, #tpu.memory_space<vmem>>, vector<4x256xf32>,
    %c55_i32 = arith.constant 55 : i32
    %30 = tpu.dynamic_rotate %13 by %c55_i32 dim 1 : vector<4x256xf32>, i32 -> vector<4x256xf32>
    %c32 = arith.constant 32 : index
    %c0_18 = arith.constant 0 : index
    %31 = vector.load %arg10[%c32, %c0_18] : memref<108x256xf32, #tpu.memory_space<vmem>>, vector<4x256xf32>
    tpu.vector_store %arg10[%c32, %c0_18], %30 {strides = array<i32>} : memref<108x256xf32, #tpu.memory_space<vmem>>, vector<4x256xf32>,
    %c9_i32 = arith.constant 9 : i32
    %32 = tpu.dynamic_rotate %13 by %c9_i32 dim 1 : vector<4x256xf32>, i32 -> vector<4x256xf32>
    %c36 = arith.constant 36 : index
    %c0_19 = arith.constant 0 : index
    %33 = vector.load %arg10[%c36, %c0_19] : memref<108x256xf32, #tpu.memory_space<vmem>>, vector<4x256xf32>
    tpu.vector_store %arg10[%c36, %c0_19], %32 {strides = array<i32>} : memref<108x256xf32, #tpu.memory_space<vmem>>, vector<4x256xf32>,
    %c8_i32 = arith.constant 8 : i32
    %34 = tpu.dynamic_rotate %13 by %c8_i32 dim 1 : vector<4x256xf32>, i32 -> vector<4x256xf32>
    %c40 = arith.constant 40 : index
    %c0_20 = arith.constant 0 : index
    %35 = vector.load %arg10[%c40, %c0_20] : memref<108x256xf32, #tpu.memory_space<vmem>>, vector<4x256xf32>
    tpu.vector_store %arg10[%c40, %c0_20], %34 {strides = array<i32>} : memref<108x256xf32, #tpu.memory_space<vmem>>, vector<4x256xf32>,
    %c7_i32 = arith.constant 7 : i32
    %36 = tpu.dynamic_rotate %13 by %c7_i32 dim 1 : vector<4x256xf32>, i32 -> vector<4x256xf32>
    %c44 = arith.constant 44 : index
    %c0_21 = arith.constant 0 : index
    %37 = vector.load %arg10[%c44, %c0_21] : memref<108x256xf32, #tpu.memory_space<vmem>>, vector<4x256xf32>
    tpu.vector_store %arg10[%c44, %c0_21], %36 {strides = array<i32>} : memref<108x256xf32, #tpu.memory_space<vmem>>, vector<4x256xf32>,
    %c1_i32 = arith.constant 1 : i32
    %38 = tpu.dynamic_rotate %13 by %c1_i32 dim 1 : vector<4x256xf32>, i32 -> vector<4x256xf32>
    %c48 = arith.constant 48 : index
    %c0_22 = arith.constant 0 : index
    %39 = vector.load %arg10[%c48, %c0_22] : memref<108x256xf32, #tpu.memory_space<vmem>>, vector<4x256xf32>
    tpu.vector_store %arg10[%c48, %c0_22], %38 {strides = array<i32>} : memref<108x256xf32, #tpu.memory_space<vmem>>, vector<4x256xf32>,
    %c52 = arith.constant 52 : index
    %c0_23 = arith.constant 0 : index
    %40 = vector.load %arg10[%c52, %c0_23] : memref<108x256xf32, #tpu.memory_space<vmem>>, vector<4x256xf32>
    tpu.vector_store %arg10[%c52, %c0_23], %13 {strides = array<i32>} : memref<108x256xf32, #tpu.memory_space<vmem>>, vector<4x256xf32>,
    %c255_i32 = arith.constant 255 : i32
    %41 = tpu.dynamic_rotate %13 by %c255_i32 dim 1 : vector<4x256xf32>, i32 -> vector<4x256xf32>
    %c56 = arith.constant 56 : index
    %c0_24 = arith.constant 0 : index
    %42 = vector.load %arg10[%c56, %c0_24] : memref<108x256xf32, #tpu.memory_space<vmem>>, vector<4x256xf32>
    tpu.vector_store %arg10[%c56, %c0_24], %41 {strides = array<i32>} : memref<108x256xf32, #tpu.memory_space<vmem>>, vector<4x256xf32>,
    %c249_i32 = arith.constant 249 : i32
    %43 = tpu.dynamic_rotate %13 by %c249_i32 dim 1 : vector<4x256xf32>, i32 -> vector<4x256xf32>
    %c60 = arith.constant 60 : index
    %c0_25 = arith.constant 0 : index
    %44 = vector.load %arg10[%c60, %c0_25] : memref<108x256xf32, #tpu.memory_space<vmem>>, vector<4x256xf32>
    tpu.vector_store %arg10[%c60, %c0_25], %43 {strides = array<i32>} : memref<108x256xf32, #tpu.memory_space<vmem>>, vector<4x256xf32>,
    %c248_i32 = arith.constant 248 : i32
    %45 = tpu.dynamic_rotate %13 by %c248_i32 dim 1 : vector<4x256xf32>, i32 -> vector<4x256xf32>
    %c64 = arith.constant 64 : index
    %c0_26 = arith.constant 0 : index
    %46 = vector.load %arg10[%c64, %c0_26] : memref<108x256xf32, #tpu.memory_space<vmem>>, vector<4x256xf32>
    tpu.vector_store %arg10[%c64, %c0_26], %45 {strides = array<i32>} : memref<108x256xf32, #tpu.memory_space<vmem>>, vector<4x256xf32>,
    %c247_i32 = arith.constant 247 : i32
    %47 = tpu.dynamic_rotate %13 by %c247_i32 dim 1 : vector<4x256xf32>, i32 -> vector<4x256xf32>
    %c68 = arith.constant 68 : index
    %c0_27 = arith.constant 0 : index
    %48 = vector.load %arg10[%c68, %c0_27] : memref<108x256xf32, #tpu.memory_space<vmem>>, vector<4x256xf32>
    tpu.vector_store %arg10[%c68, %c0_27], %47 {strides = array<i32>} : memref<108x256xf32, #tpu.memory_space<vmem>>, vector<4x256xf32>,
    %c201_i32 = arith.constant 201 : i32
    %49 = tpu.dynamic_rotate %13 by %c201_i32 dim 1 : vector<4x256xf32>, i32 -> vector<4x256xf32>
    %c72 = arith.constant 72 : index
    %c0_28 = arith.constant 0 : index
    %50 = vector.load %arg10[%c72, %c0_28] : memref<108x256xf32, #tpu.memory_space<vmem>>, vector<4x256xf32>
    tpu.vector_store %arg10[%c72, %c0_28], %49 {strides = array<i32>} : memref<108x256xf32, #tpu.memory_space<vmem>>, vector<4x256xf32>,
    %c200_i32 = arith.constant 200 : i32
    %51 = tpu.dynamic_rotate %13 by %c200_i32 dim 1 : vector<4x256xf32>, i32 -> vector<4x256xf32>
    %c76 = arith.constant 76 : index
    %c0_29 = arith.constant 0 : index
    %52 = vector.load %arg10[%c76, %c0_29] : memref<108x256xf32, #tpu.memory_space<vmem>>, vector<4x256xf32>
    tpu.vector_store %arg10[%c76, %c0_29], %51 {strides = array<i32>} : memref<108x256xf32, #tpu.memory_space<vmem>>, vector<4x256xf32>,
    %c199_i32 = arith.constant 199 : i32
    %53 = tpu.dynamic_rotate %13 by %c199_i32 dim 1 : vector<4x256xf32>, i32 -> vector<4x256xf32>
    %c80 = arith.constant 80 : index
    %c0_30 = arith.constant 0 : index
    %54 = vector.load %arg10[%c80, %c0_30] : memref<108x256xf32, #tpu.memory_space<vmem>>, vector<4x256xf32>
    tpu.vector_store %arg10[%c80, %c0_30], %53 {strides = array<i32>} : memref<108x256xf32, #tpu.memory_space<vmem>>, vector<4x256xf32>,
    %c193_i32 = arith.constant 193 : i32
    %55 = tpu.dynamic_rotate %13 by %c193_i32 dim 1 : vector<4x256xf32>, i32 -> vector<4x256xf32>
    %c84 = arith.constant 84 : index
    %c0_31 = arith.constant 0 : index
    %56 = vector.load %arg10[%c84, %c0_31] : memref<108x256xf32, #tpu.memory_space<vmem>>, vector<4x256xf32>
    tpu.vector_store %arg10[%c84, %c0_31], %55 {strides = array<i32>} : memref<108x256xf32, #tpu.memory_space<vmem>>, vector<4x256xf32>,
    %c192_i32 = arith.constant 192 : i32
    %57 = tpu.dynamic_rotate %13 by %c192_i32 dim 1 : vector<4x256xf32>, i32 -> vector<4x256xf32>
    %c88 = arith.constant 88 : index
    %c0_32 = arith.constant 0 : index
    %58 = vector.load %arg10[%c88, %c0_32] : memref<108x256xf32, #tpu.memory_space<vmem>>, vector<4x256xf32>
    tpu.vector_store %arg10[%c88, %c0_32], %57 {strides = array<i32>} : memref<108x256xf32, #tpu.memory_space<vmem>>, vector<4x256xf32>,
    %c191_i32 = arith.constant 191 : i32
    %59 = tpu.dynamic_rotate %13 by %c191_i32 dim 1 : vector<4x256xf32>, i32 -> vector<4x256xf32>
    %c92 = arith.constant 92 : index
    %c0_33 = arith.constant 0 : index
    %60 = vector.load %arg10[%c92, %c0_33] : memref<108x256xf32, #tpu.memory_space<vmem>>, vector<4x256xf32>
    tpu.vector_store %arg10[%c92, %c0_33], %59 {strides = array<i32>} : memref<108x256xf32, #tpu.memory_space<vmem>>, vector<4x256xf32>,
    %c185_i32 = arith.constant 185 : i32
    %61 = tpu.dynamic_rotate %13 by %c185_i32 dim 1 : vector<4x256xf32>, i32 -> vector<4x256xf32>
    %c96 = arith.constant 96 : index
    %c0_34 = arith.constant 0 : index
    %62 = vector.load %arg10[%c96, %c0_34] : memref<108x256xf32, #tpu.memory_space<vmem>>, vector<4x256xf32>
    tpu.vector_store %arg10[%c96, %c0_34], %61 {strides = array<i32>} : memref<108x256xf32, #tpu.memory_space<vmem>>, vector<4x256xf32>,
    %c184_i32 = arith.constant 184 : i32
    %63 = tpu.dynamic_rotate %13 by %c184_i32 dim 1 : vector<4x256xf32>, i32 -> vector<4x256xf32>
    %c100 = arith.constant 100 : index
    %c0_35 = arith.constant 0 : index
    %64 = vector.load %arg10[%c100, %c0_35] : memref<108x256xf32, #tpu.memory_space<vmem>>, vector<4x256xf32>
    tpu.vector_store %arg10[%c100, %c0_35], %63 {strides = array<i32>} : memref<108x256xf32, #tpu.memory_space<vmem>>, vector<4x256xf32>,
    %c183_i32 = arith.constant 183 : i32
    %65 = tpu.dynamic_rotate %13 by %c183_i32 dim 1 : vector<4x256xf32>, i32 -> vector<4x256xf32>
    %c104 = arith.constant 104 : index
    %c0_36 = arith.constant 0 : index
    %66 = vector.load %arg10[%c104, %c0_36] : memref<108x256xf32, #tpu.memory_space<vmem>>, vector<4x256xf32>
    tpu.vector_store %arg10[%c104, %c0_36], %65 {strides = array<i32>} : memref<108x256xf32, #tpu.memory_space<vmem>>, vector<4x256xf32>,
    %c0_37 = arith.constant 0 : index
    %c0_38 = arith.constant 0 : index
    %67 = vector.load %arg10[%c0_37, %c0_38] : memref<108x256xf32, #tpu.memory_space<vmem>>, vector<108x256xf32>
    %68 = arith.mulf %67, %2 : vector<108x256xf32>
    %c0_39 = arith.constant 0 : index
    %c0_40 = arith.constant 0 : index
    %69 = vector.load %arg6[%c0_39, %c0_40] : memref<4x108xf32, #tpu.memory_space<vmem>>, vector<4x108xf32>
    %cst_41 = arith.constant dense<0.000000e+00> : vector<4x256xf32>
    %70 = tpu.matmul %69, %68, %cst_41 {dimension_numbers = #tpu.dot_dimension_numbers<[1], [0], [0], [1], [0, 0, 1, 1], [], []>} : vector<4x108xf32>, vector<108x256xf32>, vector<4x256xf32> -> vector<4x256xf32>
    %c0_42 = arith.constant 0 : index
    %c0_43 = arith.constant 0 : index
    %71 = vector.load %arg4[%c0_42, %c0_43] : memref<4x1xf32, #tpu.memory_space<vmem>>, vector<4x1xf32>
    %72 = vector.broadcast %71 : vector<4x1xf32> to vector<4x256xf32>
    %73 = arith.mulf %70, %72 : vector<4x256xf32>
    %c0_44 = arith.constant 0 : index
    %c0_45 = arith.constant 0 : index
    %74 = vector.load %arg5[%c0_44, %c0_45] : memref<4x1xf32, #tpu.memory_space<vmem>>, vector<4x1xf32>
    %75 = vector.broadcast %74 : vector<4x1xf32> to vector<4x256xf32>
    %76 = arith.addf %73, %75 : vector<4x256xf32>
    %cst_46 = arith.constant 0.000000e+00 : f32
    %77 = vector.broadcast %cst_46 : f32 to vector<4x256xf32>
    %78 = arith.cmpf oge, %76, %77 : vector<4x256xf32>
    %cst_47 = arith.constant 0.00999999977 : f32
    %79 = vector.broadcast %cst_47 : f32 to vector<4x256xf32>
    %80 = arith.mulf %79, %76 : vector<4x256xf32>
    %81 = arith.select %78, %76, %80 : vector<4x256xi1>, vector<4x256xf32>
    %c73_i32_48 = arith.constant 73 : i32
    %82 = tpu.dynamic_rotate %81 by %c73_i32_48 dim 1 : vector<4x256xf32>, i32 -> vector<4x256xf32>
    %c0_49 = arith.constant 0 : index
    %c0_50 = arith.constant 0 : index
    %83 = vector.load %arg10[%c0_49, %c0_50] : memref<108x256xf32, #tpu.memory_space<vmem>>, vector<4x256xf32>
    tpu.vector_store %arg10[%c0_49, %c0_50], %82 {strides = array<i32>} : memref<108x256xf32, #tpu.memory_space<vmem>>, vector<4x256xf32>,
    %c72_i32_51 = arith.constant 72 : i32
    %84 = tpu.dynamic_rotate %81 by %c72_i32_51 dim 1 : vector<4x256xf32>, i32 -> vector<4x256xf32>
    %c4_52 = arith.constant 4 : index
    %c0_53 = arith.constant 0 : index
    %85 = vector.load %arg10[%c4_52, %c0_53] : memref<108x256xf32, #tpu.memory_space<vmem>>, vector<4x256xf32>
    tpu.vector_store %arg10[%c4_52, %c0_53], %84 {strides = array<i32>} : memref<108x256xf32, #tpu.memory_space<vmem>>, vector<4x256xf32>,
    %c71_i32_54 = arith.constant 71 : i32
    %86 = tpu.dynamic_rotate %81 by %c71_i32_54 dim 1 : vector<4x256xf32>, i32 -> vector<4x256xf32>
    %c8_55 = arith.constant 8 : index
    %c0_56 = arith.constant 0 : index
    %87 = vector.load %arg10[%c8_55, %c0_56] : memref<108x256xf32, #tpu.memory_space<vmem>>, vector<4x256xf32>
    tpu.vector_store %arg10[%c8_55, %c0_56], %86 {strides = array<i32>} : memref<108x256xf32, #tpu.memory_space<vmem>>, vector<4x256xf32>,
    %c65_i32_57 = arith.constant 65 : i32
    %88 = tpu.dynamic_rotate %81 by %c65_i32_57 dim 1 : vector<4x256xf32>, i32 -> vector<4x256xf32>
    %c12_58 = arith.constant 12 : index
    %c0_59 = arith.constant 0 : index
    %89 = vector.load %arg10[%c12_58, %c0_59] : memref<108x256xf32, #tpu.memory_space<vmem>>, vector<4x256xf32>
    tpu.vector_store %arg10[%c12_58, %c0_59], %88 {strides = array<i32>} : memref<108x256xf32, #tpu.memory_space<vmem>>, vector<4x256xf32>,
    %c64_i32_60 = arith.constant 64 : i32
    %90 = tpu.dynamic_rotate %81 by %c64_i32_60 dim 1 : vector<4x256xf32>, i32 -> vector<4x256xf32>
    %c16_61 = arith.constant 16 : index
    %c0_62 = arith.constant 0 : index
    %91 = vector.load %arg10[%c16_61, %c0_62] : memref<108x256xf32, #tpu.memory_space<vmem>>, vector<4x256xf32>
    tpu.vector_store %arg10[%c16_61, %c0_62], %90 {strides = array<i32>} : memref<108x256xf32, #tpu.memory_space<vmem>>, vector<4x256xf32>,
    %c63_i32_63 = arith.constant 63 : i32
    %92 = tpu.dynamic_rotate %81 by %c63_i32_63 dim 1 : vector<4x256xf32>, i32 -> vector<4x256xf32>
    %c20_64 = arith.constant 20 : index
    %c0_65 = arith.constant 0 : index
    %93 = vector.load %arg10[%c20_64, %c0_65] : memref<108x256xf32, #tpu.memory_space<vmem>>, vector<4x256xf32>
    tpu.vector_store %arg10[%c20_64, %c0_65], %92 {strides = array<i32>} : memref<108x256xf32, #tpu.memory_space<vmem>>, vector<4x256xf32>,
    %c57_i32_66 = arith.constant 57 : i32
    %94 = tpu.dynamic_rotate %81 by %c57_i32_66 dim 1 : vector<4x256xf32>, i32 -> vector<4x256xf32>
    %c24_67 = arith.constant 24 : index
    %c0_68 = arith.constant 0 : index
    %95 = vector.load %arg10[%c24_67, %c0_68] : memref<108x256xf32, #tpu.memory_space<vmem>>, vector<4x256xf32>
    tpu.vector_store %arg10[%c24_67, %c0_68], %94 {strides = array<i32>} : memref<108x256xf32, #tpu.memory_space<vmem>>, vector<4x256xf32>,
    %c56_i32_69 = arith.constant 56 : i32
    %96 = tpu.dynamic_rotate %81 by %c56_i32_69 dim 1 : vector<4x256xf32>, i32 -> vector<4x256xf32>
    %c28_70 = arith.constant 28 : index
    %c0_71 = arith.constant 0 : index
    %97 = vector.load %arg10[%c28_70, %c0_71] : memref<108x256xf32, #tpu.memory_space<vmem>>, vector<4x256xf32>
    tpu.vector_store %arg10[%c28_70, %c0_71], %96 {strides = array<i32>} : memref<108x256xf32, #tpu.memory_space<vmem>>, vector<4x256xf32>,
    %c55_i32_72 = arith.constant 55 : i32
    %98 = tpu.dynamic_rotate %81 by %c55_i32_72 dim 1 : vector<4x256xf32>, i32 -> vector<4x256xf32>
    %c32_73 = arith.constant 32 : index
    %c0_74 = arith.constant 0 : index
    %99 = vector.load %arg10[%c32_73, %c0_74] : memref<108x256xf32, #tpu.memory_space<vmem>>, vector<4x256xf32>
    tpu.vector_store %arg10[%c32_73, %c0_74], %98 {strides = array<i32>} : memref<108x256xf32, #tpu.memory_space<vmem>>, vector<4x256xf32>,
    %c9_i32_75 = arith.constant 9 : i32
    %100 = tpu.dynamic_rotate %81 by %c9_i32_75 dim 1 : vector<4x256xf32>, i32 -> vector<4x256xf32>
    %c36_76 = arith.constant 36 : index
    %c0_77 = arith.constant 0 : index
    %101 = vector.load %arg10[%c36_76, %c0_77] : memref<108x256xf32, #tpu.memory_space<vmem>>, vector<4x256xf32>
    tpu.vector_store %arg10[%c36_76, %c0_77], %100 {strides = array<i32>} : memref<108x256xf32, #tpu.memory_space<vmem>>, vector<4x256xf32>,
    %c8_i32_78 = arith.constant 8 : i32
    %102 = tpu.dynamic_rotate %81 by %c8_i32_78 dim 1 : vector<4x256xf32>, i32 -> vector<4x256xf32>
    %c40_79 = arith.constant 40 : index
    %c0_80 = arith.constant 0 : index
    %103 = vector.load %arg10[%c40_79, %c0_80] : memref<108x256xf32, #tpu.memory_space<vmem>>, vector<4x256xf32>
    tpu.vector_store %arg10[%c40_79, %c0_80], %102 {strides = array<i32>} : memref<108x256xf32, #tpu.memory_space<vmem>>, vector<4x256xf32>,
    %c7_i32_81 = arith.constant 7 : i32
    %104 = tpu.dynamic_rotate %81 by %c7_i32_81 dim 1 : vector<4x256xf32>, i32 -> vector<4x256xf32>
    %c44_82 = arith.constant 44 : index
    %c0_83 = arith.constant 0 : index
    %105 = vector.load %arg10[%c44_82, %c0_83] : memref<108x256xf32, #tpu.memory_space<vmem>>, vector<4x256xf32>
    tpu.vector_store %arg10[%c44_82, %c0_83], %104 {strides = array<i32>} : memref<108x256xf32, #tpu.memory_space<vmem>>, vector<4x256xf32>,
    %c1_i32_84 = arith.constant 1 : i32
    %106 = tpu.dynamic_rotate %81 by %c1_i32_84 dim 1 : vector<4x256xf32>, i32 -> vector<4x256xf32>
    %c48_85 = arith.constant 48 : index
    %c0_86 = arith.constant 0 : index
    %107 = vector.load %arg10[%c48_85, %c0_86] : memref<108x256xf32, #tpu.memory_space<vmem>>, vector<4x256xf32>
    tpu.vector_store %arg10[%c48_85, %c0_86], %106 {strides = array<i32>} : memref<108x256xf32, #tpu.memory_space<vmem>>, vector<4x256xf32>,
    %c52_87 = arith.constant 52 : index
    %c0_88 = arith.constant 0 : index
    %108 = vector.load %arg10[%c52_87, %c0_88] : memref<108x256xf32, #tpu.memory_space<vmem>>, vector<4x256xf32>
    tpu.vector_store %arg10[%c52_87, %c0_88], %81 {strides = array<i32>} : memref<108x256xf32, #tpu.memory_space<vmem>>, vector<4x256xf32>,
    %c255_i32_89 = arith.constant 255 : i32
    %109 = tpu.dynamic_rotate %81 by %c255_i32_89 dim 1 : vector<4x256xf32>, i32 -> vector<4x256xf32>
    %c56_90 = arith.constant 56 : index
    %c0_91 = arith.constant 0 : index
    %110 = vector.load %arg10[%c56_90, %c0_91] : memref<108x256xf32, #tpu.memory_space<vmem>>, vector<4x256xf32>
    tpu.vector_store %arg10[%c56_90, %c0_91], %109 {strides = array<i32>} : memref<108x256xf32, #tpu.memory_space<vmem>>, vector<4x256xf32>,
    %c249_i32_92 = arith.constant 249 : i32
    %111 = tpu.dynamic_rotate %81 by %c249_i32_92 dim 1 : vector<4x256xf32>, i32 -> vector<4x256xf32>
    %c60_93 = arith.constant 60 : index
    %c0_94 = arith.constant 0 : index
    %112 = vector.load %arg10[%c60_93, %c0_94] : memref<108x256xf32, #tpu.memory_space<vmem>>, vector<4x256xf32>
    tpu.vector_store %arg10[%c60_93, %c0_94], %111 {strides = array<i32>} : memref<108x256xf32, #tpu.memory_space<vmem>>, vector<4x256xf32>,
    %c248_i32_95 = arith.constant 248 : i32
    %113 = tpu.dynamic_rotate %81 by %c248_i32_95 dim 1 : vector<4x256xf32>, i32 -> vector<4x256xf32>
    %c64_96 = arith.constant 64 : index
    %c0_97 = arith.constant 0 : index
    %114 = vector.load %arg10[%c64_96, %c0_97] : memref<108x256xf32, #tpu.memory_space<vmem>>, vector<4x256xf32>
    tpu.vector_store %arg10[%c64_96, %c0_97], %113 {strides = array<i32>} : memref<108x256xf32, #tpu.memory_space<vmem>>, vector<4x256xf32>,
    %c247_i32_98 = arith.constant 247 : i32
    %115 = tpu.dynamic_rotate %81 by %c247_i32_98 dim 1 : vector<4x256xf32>, i32 -> vector<4x256xf32>
    %c68_99 = arith.constant 68 : index
    %c0_100 = arith.constant 0 : index
    %116 = vector.load %arg10[%c68_99, %c0_100] : memref<108x256xf32, #tpu.memory_space<vmem>>, vector<4x256xf32>
    tpu.vector_store %arg10[%c68_99, %c0_100], %115 {strides = array<i32>} : memref<108x256xf32, #tpu.memory_space<vmem>>, vector<4x256xf32>,
    %c201_i32_101 = arith.constant 201 : i32
    %117 = tpu.dynamic_rotate %81 by %c201_i32_101 dim 1 : vector<4x256xf32>, i32 -> vector<4x256xf32>
    %c72_102 = arith.constant 72 : index
    %c0_103 = arith.constant 0 : index
    %118 = vector.load %arg10[%c72_102, %c0_103] : memref<108x256xf32, #tpu.memory_space<vmem>>, vector<4x256xf32>
    tpu.vector_store %arg10[%c72_102, %c0_103], %117 {strides = array<i32>} : memref<108x256xf32, #tpu.memory_space<vmem>>, vector<4x256xf32>,
    %c200_i32_104 = arith.constant 200 : i32
    %119 = tpu.dynamic_rotate %81 by %c200_i32_104 dim 1 : vector<4x256xf32>, i32 -> vector<4x256xf32>
    %c76_105 = arith.constant 76 : index
    %c0_106 = arith.constant 0 : index
    %120 = vector.load %arg10[%c76_105, %c0_106] : memref<108x256xf32, #tpu.memory_space<vmem>>, vector<4x256xf32>
    tpu.vector_store %arg10[%c76_105, %c0_106], %119 {strides = array<i32>} : memref<108x256xf32, #tpu.memory_space<vmem>>, vector<4x256xf32>,
    %c199_i32_107 = arith.constant 199 : i32
    %121 = tpu.dynamic_rotate %81 by %c199_i32_107 dim 1 : vector<4x256xf32>, i32 -> vector<4x256xf32>
    %c80_108 = arith.constant 80 : index
    %c0_109 = arith.constant 0 : index
    %122 = vector.load %arg10[%c80_108, %c0_109] : memref<108x256xf32, #tpu.memory_space<vmem>>, vector<4x256xf32>
    tpu.vector_store %arg10[%c80_108, %c0_109], %121 {strides = array<i32>} : memref<108x256xf32, #tpu.memory_space<vmem>>, vector<4x256xf32>,
    %c193_i32_110 = arith.constant 193 : i32
    %123 = tpu.dynamic_rotate %81 by %c193_i32_110 dim 1 : vector<4x256xf32>, i32 -> vector<4x256xf32>
    %c84_111 = arith.constant 84 : index
    %c0_112 = arith.constant 0 : index
    %124 = vector.load %arg10[%c84_111, %c0_112] : memref<108x256xf32, #tpu.memory_space<vmem>>, vector<4x256xf32>
    tpu.vector_store %arg10[%c84_111, %c0_112], %123 {strides = array<i32>} : memref<108x256xf32, #tpu.memory_space<vmem>>, vector<4x256xf32>,
    %c192_i32_113 = arith.constant 192 : i32
    %125 = tpu.dynamic_rotate %81 by %c192_i32_113 dim 1 : vector<4x256xf32>, i32 -> vector<4x256xf32>
    %c88_114 = arith.constant 88 : index
    %c0_115 = arith.constant 0 : index
    %126 = vector.load %arg10[%c88_114, %c0_115] : memref<108x256xf32, #tpu.memory_space<vmem>>, vector<4x256xf32>
    tpu.vector_store %arg10[%c88_114, %c0_115], %125 {strides = array<i32>} : memref<108x256xf32, #tpu.memory_space<vmem>>, vector<4x256xf32>,
    %c191_i32_116 = arith.constant 191 : i32
    %127 = tpu.dynamic_rotate %81 by %c191_i32_116 dim 1 : vector<4x256xf32>, i32 -> vector<4x256xf32>
    %c92_117 = arith.constant 92 : index
    %c0_118 = arith.constant 0 : index
    %128 = vector.load %arg10[%c92_117, %c0_118] : memref<108x256xf32, #tpu.memory_space<vmem>>, vector<4x256xf32>
    tpu.vector_store %arg10[%c92_117, %c0_118], %127 {strides = array<i32>} : memref<108x256xf32, #tpu.memory_space<vmem>>, vector<4x256xf32>,
    %c185_i32_119 = arith.constant 185 : i32
    %129 = tpu.dynamic_rotate %81 by %c185_i32_119 dim 1 : vector<4x256xf32>, i32 -> vector<4x256xf32>
    %c96_120 = arith.constant 96 : index
    %c0_121 = arith.constant 0 : index
    %130 = vector.load %arg10[%c96_120, %c0_121] : memref<108x256xf32, #tpu.memory_space<vmem>>, vector<4x256xf32>
    tpu.vector_store %arg10[%c96_120, %c0_121], %129 {strides = array<i32>} : memref<108x256xf32, #tpu.memory_space<vmem>>, vector<4x256xf32>,
    %c184_i32_122 = arith.constant 184 : i32
    %131 = tpu.dynamic_rotate %81 by %c184_i32_122 dim 1 : vector<4x256xf32>, i32 -> vector<4x256xf32>
    %c100_123 = arith.constant 100 : index
    %c0_124 = arith.constant 0 : index
    %132 = vector.load %arg10[%c100_123, %c0_124] : memref<108x256xf32, #tpu.memory_space<vmem>>, vector<4x256xf32>
    tpu.vector_store %arg10[%c100_123, %c0_124], %131 {strides = array<i32>} : memref<108x256xf32, #tpu.memory_space<vmem>>, vector<4x256xf32>,
    %c183_i32_125 = arith.constant 183 : i32
    %133 = tpu.dynamic_rotate %81 by %c183_i32_125 dim 1 : vector<4x256xf32>, i32 -> vector<4x256xf32>
    %c104_126 = arith.constant 104 : index
    %c0_127 = arith.constant 0 : index
    %134 = vector.load %arg10[%c104_126, %c0_127] : memref<108x256xf32, #tpu.memory_space<vmem>>, vector<4x256xf32>
    tpu.vector_store %arg10[%c104_126, %c0_127], %133 {strides = array<i32>} : memref<108x256xf32, #tpu.memory_space<vmem>>, vector<4x256xf32>,
    %c0_128 = arith.constant 0 : index
    %c0_129 = arith.constant 0 : index
    %135 = vector.load %arg10[%c0_128, %c0_129] : memref<108x256xf32, #tpu.memory_space<vmem>>, vector<108x256xf32>
    %136 = arith.mulf %135, %2 : vector<108x256xf32>
    %c0_130 = arith.constant 0 : index
    %c0_131 = arith.constant 0 : index
    %137 = vector.load %arg7[%c0_130, %c0_131] : memref<4x108xf32, #tpu.memory_space<vmem>>, vector<4x108xf32>
    %cst_132 = arith.constant dense<0.000000e+00> : vector<4x256xf32>
    %138 = tpu.matmul %137, %136, %cst_132 {dimension_numbers = #tpu.dot_dimension_numbers<[1], [0], [0], [1], [0, 0, 1, 1], [], []>} : vector<4x108xf32>, vector<108x256xf32>, vector<4x256xf32> -> vector<4x256xf32>
    %139 = arith.addf %138, %1 : vector<4x256xf32>
    %c0_133 = arith.constant 0 : index
    %c0_134 = arith.constant 0 : index
    %c0_135 = arith.constant 0 : index
    %140 = vector.load %arg9[%c0_133, %c0_134, %c0_135] : memref<1x4x256xf32, #tpu.memory_space<vmem>>, vector<1x4x256xf32>
    %141 = vector.shape_cast %140 : vector<1x4x256xf32> to vector<4x256xf32>
    %142 = vector.shape_cast %139 : vector<4x256xf32> to vector<1x4x256xf32>
    tpu.vector_store %arg9[%c0_133, %c0_134, %c0_135], %142 {strides = array<i32>} : memref<1x4x256xf32, #tpu.memory_space<vmem>>, vector<1x4x256xf32>,
    return
  }
  func.func @transform_0(%arg0: i32) -> (i32, i32, i32) {
    %c0_i32 = arith.constant 0 : i32
    %c0_i32_0 = arith.constant 0 : i32
    %c0_i32_1 = arith.constant 0 : i32
    return %arg0, %c0_i32, %c0_i32_0 : i32, i32, i32
  }
  func.func @transform_1(%arg0: i32) -> (i32, i32) {
    %c0_i32 = arith.constant 0 : i32
    %c0_i32_0 = arith.constant 0 : i32
    %c0_i32_1 = arith.constant 0 : i32
    return %c0_i32, %c0_i32_0 : i32, i32
  }
  func.func @transform_2(%arg0: i32) -> (i32, i32) {
    %c0_i32 = arith.constant 0 : i32
    %c0_i32_0 = arith.constant 0 : i32
    %c0_i32_1 = arith.constant 0 : i32
    return %c0_i32, %c0_i32_0 : i32, i32
  }
  func.func @transform_3(%arg0: i32) -> (i32, i32) {
    %c0_i32 = arith.constant 0 : i32
    %c0_i32_0 = arith.constant 0 : i32
    %c0_i32_1 = arith.constant 0 : i32
    return %c0_i32, %c0_i32_0 : i32, i32
  }
  func.func @transform_4(%arg0: i32) -> (i32, i32) {
    %c0_i32 = arith.constant 0 : i32
    %c0_i32_0 = arith.constant 0 : i32
    %c0_i32_1 = arith.constant 0 : i32
    return %c0_i32, %c0_i32_0 : i32, i32
  }
  func.func @transform_5(%arg0: i32) -> (i32, i32) {
    %c0_i32 = arith.constant 0 : i32
    %c0_i32_0 = arith.constant 0 : i32
    %c0_i32_1 = arith.constant 0 : i32
    return %c0_i32, %c0_i32_0 : i32, i32
  }
  func.func @transform_6(%arg0: i32) -> (i32, i32) {
    %c0_i32 = arith.constant 0 : i32
    %c0_i32_0 = arith.constant 0 : i32
    %c0_i32_1 = arith.constant 0 : i32
    return %c0_i32, %c0_i32_0 : i32, i32
  }
  func.func @transform_7(%arg0: i32) -> (i32, i32) {
    %c0_i32 = arith.constant 0 : i32
    %c0_i32_0 = arith.constant 0 : i32
    %c0_i32_1 = arith.constant 0 : i32
    return %c0_i32, %c0_i32_0 : i32, i32
  }
  func.func @transform_8(%arg0: i32) -> (i32, i32, i32) {
    %c0_i32 = arith.constant 0 : i32
    %c0_i32_0 = arith.constant 0 : i32
    %c0_i32_1 = arith.constant 0 : i32
    return %arg0, %c0_i32, %c0_i32_0 : i32, i32, i32
  }
}

</mosaic_0001>

<llo_original>
// kernel: tpu_custom_call.1
$region0: #{tpu_custom_call.1}
  #allocation0 [shape = 'u32[]', space=smem, size = 0x4, offset = 0x4, fixed_abs, tag = 'smem constant byte address 0x4 - core index']
  #allocation1 [shape = 'u32[72,128]{1,0:T(1,128)}', space=vmem, size = 0x9000, scoped, tag = 'internal scratch']
  #allocation2 [shape = 'f32[108,256]{1,0:T(8,128)}', space=vmem, size = 0x1c000, scoped, tag = 'scratch operand']
  %s0 = inlined_call_operand.hbm [shape: f32[2,4,256], index: 0, kind: input, shape index: {}]
  %s1 = inlined_call_operand.vmem [shape: f32[4,1], index: 1, kind: input, shape index: {}]
  %s2 = inlined_call_operand.vmem [shape: f32[4,1], index: 2, kind: input, shape index: {}]
  %s3 = inlined_call_operand.vmem [shape: f32[4,1], index: 3, kind: input, shape index: {}]
  %s4 = inlined_call_operand.vmem [shape: f32[4,1], index: 4, kind: input, shape index: {}]
  %s5 = inlined_call_operand.vmem [shape: f32[4,108], index: 5, kind: input, shape index: {}]
  %s6 = inlined_call_operand.vmem [shape: f32[4,108], index: 6, kind: input, shape index: {}]
  %s7 = inlined_call_operand.hbm [shape: f32[108,256], index: 7, kind: input, shape index: {}]
  %s8 = inlined_call_operand.hbm [shape: f32[2,4,256], index: 8, kind: output, shape index: {}]
  %s9 = sld [smem:[#allocation0]]
  $region73: #{tpu_custom_call.1} parent=0
    _
  %s11 = ssub.s32 1, %s9
  %s12 = scalar_select 0, %s11, %s9
  $region1: #{tpu_custom_call.1} parent=0
    #allocation3 [shape = 'u8[8192]{0}', space=vmem, size = 0x2000, scoped, tag = 'input window, operand 0']
    #allocation4 [shape = 's32[2]{0}', space=sflag, size = 0x8, scoped, tag = 'scoped memory for tpu_custom_call.1']
    #allocation5 [shape = 's32[2]{0}', space=sflag, size = 0x8, scoped, tag = 'scoped memory for tpu_custom_call.1']
    #allocation6 [shape = 'u8[114688]{0}', space=vmem, size = 0x1c000, scoped, tag = 'input window, operand 7, single buffered']
    #allocation7 [shape = 's32[1]{0}', space=sflag, size = 0x4, scoped, tag = 'scoped memory for tpu_custom_call.1']
    #allocation8 [shape = 'u8[8192]{0}', space=vmem, size = 0x2000, scoped, tag = 'output window, operand 0']
    %13 = vsyncpa [#allocation4], 0
    %s14 = scalar_lea.sflag [#allocation4], 1
    %15 = vsyncpa %s14, 0
    %16 = vsyncpa [#allocation7], 0
    %17 = vsyncpa [#allocation5], 0
    %s18 = scalar_lea.sflag [#allocation5], 1
    %19 = vsyncpa %s18, 0
    loop: start=0, step=1, limit=4
    $region2: #{tpu_custom_call.1} parent=1 // loop_pre_header
      _
    $region3: #{tpu_custom_call.1} parent=1 // loop_header
      %s21 = sphi 0, %s25
      %p22 = scmp.ge.s32.totalorder %s21, 4
      %s31 = sphi 0, %s33
      %s34 = sphi 0, %s31
      %s35 = sphi 0, %s34
      %s51 = sphi 0, %s35
      %s55 = sphi 0, %s55
      %s57 = sphi 0, %s55
      %s58 = sphi 0, %s57
      %s72 = sphi 0, %s58
      %s76 = sphi 0, %s76
      %s78 = sphi 0, %s76
      %s79 = sphi 0, %s78
      %s93 = sphi 0, %s79
      %s97 = sphi 0, %s97
      %s99 = sphi 0, %s97
      %s100 = sphi 0, %s99
      %s114 = sphi 0, %s100
      %s118 = sphi 0, %s118
      %s120 = sphi 0, %s118
      %s121 = sphi 0, %s120
      %s135 = sphi 0, %s121
      %s139 = sphi 0, %s139
      %s141 = sphi 0, %s139
      %s142 = sphi 0, %s141
      %s156 = sphi 0, %s142
      %s160 = sphi 0, %s160
      %s162 = sphi 0, %s160
      %s163 = sphi 0, %s162
      %s177 = sphi 0, %s163
      %s181 = sphi 0, %s181
      %s183 = sphi 0, %s181
      %s184 = sphi 0, %s183
      %s198 = sphi 0, %s184
      %s204 = sphi 0, %s206
      %s207 = sphi 0, %s204
      %s208 = sphi 0, %s207
      %s224 = sphi 0, %s208
    $region4: #{tpu_custom_call.1} parent=1 // loop_header_branch
      %24 = sbr.rel (%p22) target = $region8
    $region5: #{tpu_custom_call.1} parent=1 // loop_body
      %s26 = ssub.s32 %s21, 1
      %s27 = ssub.s32 %s21, 2
      %s28 = sadd.s32 %s21, 1
      %s29 = ssub.s32 %s21, %s28
      %p30 = scmp.eq.s32.totalorder %s29, 0
      %s32 = sadd.s32 %s31, 1
      %s33 = scalar_select %p30, %s31, %s32
      %p36 = pneg %p30
      %p37 = scmp.eq.s32.totalorder %s21, 1
      %p38 = por %p36, %p37
      %p39 = scmp.ne.s32.totalorder %s31, %s34
      %p40 = scmp.eq.s32.totalorder %s21, 0
      %p41 = por %p39, %p40
      %p42 = scmp.ne.s32.totalorder %s31, %s34
      %p43 = scmp.eq.s32.totalorder %s26, 1
      %p44 = por %p42, %p43
      %p45 = scmp.ne.s32.totalorder %s34, %s35
      %p46 = scmp.eq.s32.totalorder %s26, 0
      %p47 = por %p45, %p46
      %p48 = scmp.ne.s32.totalorder %s34, %s35
      %p49 = scmp.eq.s32.totalorder %s27, 1
      %p50 = por %p48, %p49
      %p52 = scmp.ne.s32.totalorder %s35, %s51
      %p53 = scmp.eq.s32.totalorder %s27, 0
      %p54 = por %p52, %p53
      %s56 = sadd.s32 %s55, 1
      %p59 = scmp.eq.s32.totalorder %s21, 1
      %p60 = scmp.ne.s32.totalorder %s55, %s57
      %p61 = scmp.eq.s32.totalorder %s21, 0
      %p62 = por %p60, %p61
      %p63 = scmp.ne.s32.totalorder %s55, %s57
      %p64 = scmp.eq.s32.totalorder %s26, 1
      %p65 = por %p63, %p64
      %p66 = scmp.ne.s32.totalorder %s57, %s58
      %p67 = scmp.eq.s32.totalorder %s26, 0
      %p68 = por %p66, %p67
      %p69 = scmp.ne.s32.totalorder %s57, %s58
      %p70 = scmp.eq.s32.totalorder %s27, 1
      %p71 = por %p69, %p70
      %p73 = scmp.ne.s32.totalorder %s58, %s72
      %p74 = scmp.eq.s32.totalorder %s27, 0
      %p75 = por %p73, %p74
      %s77 = sadd.s32 %s76, 1
      %p80 = scmp.eq.s32.totalorder %s21, 1
      %p81 = scmp.ne.s32.totalorder %s76, %s78
      %p82 = scmp.eq.s32.totalorder %s21, 0
      %p83 = por %p81, %p82
      %p84 = scmp.ne.s32.totalorder %s76, %s78
      %p85 = scmp.eq.s32.totalorder %s26, 1
      %p86 = por %p84, %p85
      %p87 = scmp.ne.s32.totalorder %s78, %s79
      %p88 = scmp.eq.s32.totalorder %s26, 0
      %p89 = por %p87, %p88
      %p90 = scmp.ne.s32.totalorder %s78, %s79
      %p91 = scmp.eq.s32.totalorder %s27, 1
      %p92 = por %p90, %p91
      %p94 = scmp.ne.s32.totalorder %s79, %s93
      %p95 = scmp.eq.s32.totalorder %s27, 0
      %p96 = por %p94, %p95
      %s98 = sadd.s32 %s97, 1
      %p101 = scmp.eq.s32.totalorder %s21, 1
      %p102 = scmp.ne.s32.totalorder %s97, %s99
      %p103 = scmp.eq.s32.totalorder %s21, 0
      %p104 = por %p102, %p103
      %p105 = scmp.ne.s32.totalorder %s97, %s99
      %p106 = scmp.eq.s32.totalorder %s26, 1
      %p107 = por %p105, %p106
      %p108 = scmp.ne.s32.totalorder %s99, %s100
      %p109 = scmp.eq.s32.totalorder %s26, 0
      %p110 = por %p108, %p109
      %p111 = scmp.ne.s32.totalorder %s99, %s100
      %p112 = scmp.eq.s32.totalorder %s27, 1
      %p113 = por %p111, %p112
      %p115 = scmp.ne.s32.totalorder %s100, %s114
      %p116 = scmp.eq.s32.totalorder %s27, 0
      %p117 = por %p115, %p116
      %s119 = sadd.s32 %s118, 1
      %p122 = scmp.eq.s32.totalorder %s21, 1
      %p123 = scmp.ne.s32.totalorder %s118, %s120
      %p124 = scmp.eq.s32.totalorder %s21, 0
      %p125 = por %p123, %p124
      %p126 = scmp.ne.s32.totalorder %s118, %s120
      %p127 = scmp.eq.s32.totalorder %s26, 1
      %p128 = por %p126, %p127
      %p129 = scmp.ne.s32.totalorder %s120, %s121
      %p130 = scmp.eq.s32.totalorder %s26, 0
      %p131 = por %p129, %p130
      %p132 = scmp.ne.s32.totalorder %s120, %s121
      %p133 = scmp.eq.s32.totalorder %s27, 1
      %p134 = por %p132, %p133
      %p136 = scmp.ne.s32.totalorder %s121, %s135
      %p137 = scmp.eq.s32.totalorder %s27, 0
      %p138 = por %p136, %p137
      %s140 = sadd.s32 %s139, 1
      %p143 = scmp.eq.s32.totalorder %s21, 1
      %p144 = scmp.ne.s32.totalorder %s139, %s141
      %p145 = scmp.eq.s32.totalorder %s21, 0
      %p146 = por %p144, %p145
      %p147 = scmp.ne.s32.totalorder %s139, %s141
      %p148 = scmp.eq.s32.totalorder %s26, 1
      %p149 = por %p147, %p148
      %p150 = scmp.ne.s32.totalorder %s141, %s142
      %p151 = scmp.eq.s32.totalorder %s26, 0
      %p152 = por %p150, %p151
      %p153 = scmp.ne.s32.totalorder %s141, %s142
      %p154 = scmp.eq.s32.totalorder %s27, 1
      %p155 = por %p153, %p154
      %p157 = scmp.ne.s32.totalorder %s142, %s156
      %p158 = scmp.eq.s32.totalorder %s27, 0
      %p159 = por %p157, %p158
      %s161 = sadd.s32 %s160, 1
      %p164 = scmp.eq.s32.totalorder %s21, 1
      %p165 = scmp.ne.s32.totalorder %s160, %s162
      %p166 = scmp.eq.s32.totalorder %s21, 0
      %p167 = por %p165, %p166
      %p168 = scmp.ne.s32.totalorder %s160, %s162
      %p169 = scmp.eq.s32.totalorder %s26, 1
      %p170 = por %p168, %p169
      %p171 = scmp.ne.s32.totalorder %s162, %s163
      %p172 = scmp.eq.s32.totalorder %s26, 0
      %p173 = por %p171, %p172
      %p174 = scmp.ne.s32.totalorder %s162, %s163
      %p175 = scmp.eq.s32.totalorder %s27, 1
      %p176 = por %p174, %p175
      %p178 = scmp.ne.s32.totalorder %s163, %s177
      %p179 = scmp.eq.s32.totalorder %s27, 0
      %p180 = por %p178, %p179
      %s182 = sadd.s32 %s181, 1
      %p185 = scmp.eq.s32.totalorder %s21, 1
      %p186 = scmp.ne.s32.totalorder %s181, %s183
      %p187 = scmp.eq.s32.totalorder %s21, 0
      %p188 = por %p186, %p187
      %p189 = scmp.ne.s32.totalorder %s181, %s183
      %p190 = scmp.eq.s32.totalorder %s26, 1
      %p191 = por %p189, %p190
      %p192 = scmp.ne.s32.totalorder %s183, %s184
      %p193 = scmp.eq.s32.totalorder %s26, 0
      %p194 = por %p192, %p193
      %p195 = scmp.ne.s32.totalorder %s183, %s184
      %p196 = scmp.eq.s32.totalorder %s27, 1
      %p197 = por %p195, %p196
      %p199 = scmp.ne.s32.totalorder %s184, %s198
      %p200 = scmp.eq.s32.totalorder %s27, 0
      %p201 = por %p199, %p200
      %s202 = ssub.s32 %s21, %s28
      %p203 = scmp.eq.s32.totalorder %s202, 0
      %s205 = sadd.s32 %s204, 1
      %s206 = scalar_select %p203, %s204, %s205
      %p209 = pneg %p203
      %p210 = scmp.eq.s32.totalorder %s21, 1
      %p211 = por %p209, %p210
      %p212 = scmp.ne.s32.totalorder %s204, %s207
      %p213 = scmp.eq.s32.totalorder %s21, 0
      %p214 = por %p212, %p213
      %p215 = scmp.ne.s32.totalorder %s204, %s207
      %p216 = scmp.eq.s32.totalorder %s26, 1
      %p217 = por %p215, %p216
      %p218 = scmp.ne.s32.totalorder %s207, %s208
      %p219 = scmp.eq.s32.totalorder %s26, 0
      %p220 = por %p218, %p219
      %p221 = scmp.ne.s32.totalorder %s207, %s208
      %p222 = scmp.eq.s32.totalorder %s27, 1
      %p223 = por %p221, %p222
      %p225 = scmp.ne.s32.totalorder %s208, %s224
      %p226 = scmp.eq.s32.totalorder %s27, 0
      %p227 = por %p225, %p226
      %p228 = scmp.le.s32.totalorder 1, %s21
      %p229 = scmp.lt.s32.totalorder %s21, 3
      %p230 = pnand %p228, %p229
      %p231 = pneg %p230
      // Predicated region
      $region9: #{tpu_custom_call.1} parent=5 // pred_check
        _
      $region10: #{tpu_custom_call.1} parent=5 // pred_check_branch
        %233 = sbr.rel (%p230) target = $region12
      $region11: #{tpu_custom_call.1} parent=5 // pred_region
        %s234 = ssub.s32 %s21, 1
        // Predicated region
        $region13: #{tpu_custom_call.1} parent=11 // pred_check
          %p235 = pneg %p68
        $region14: #{tpu_custom_call.1} parent=11 // pred_check_branch
          %237 = sbr.rel (%p235) target = $region16
        $region15: #{tpu_custom_call.1} parent=11 // pred_region
          _
        $region16: #{tpu_custom_call.1} parent=11 // pred_fallthru
          _
        // Predicated region
        $region17: #{tpu_custom_call.1} parent=11 // pred_check
          %p238 = pneg %p89
        $region18: #{tpu_custom_call.1} parent=11 // pred_check_branch
          %240 = sbr.rel (%p238) target = $region20
        $region19: #{tpu_custom_call.1} parent=11 // pred_region
          _
        $region20: #{tpu_custom_call.1} parent=11 // pred_fallthru
          _
        // Predicated region
        $region21: #{tpu_custom_call.1} parent=11 // pred_check
          %p241 = pneg %p110
        $region22: #{tpu_custom_call.1} parent=11 // pred_check_branch
          %243 = sbr.rel (%p241) target = $region24
        $region23: #{tpu_custom_call.1} parent=11 // pred_region
          _
        $region24: #{tpu_custom_call.1} parent=11 // pred_fallthru
          _
        // Predicated region
        $region25: #{tpu_custom_call.1} parent=11 // pred_check
          %p244 = pneg %p131
        $region26: #{tpu_custom_call.1} parent=11 // pred_check_branch
          %246 = sbr.rel (%p244) target = $region28
        $region27: #{tpu_custom_call.1} parent=11 // pred_region
          _
        $region28: #{tpu_custom_call.1} parent=11 // pred_fallthru
          _
        // Predicated region
        $region29: #{tpu_custom_call.1} parent=11 // pred_check
          %p247 = pneg %p152
        $region30: #{tpu_custom_call.1} parent=11 // pred_check_branch
          %249 = sbr.rel (%p247) target = $region32
        $region31: #{tpu_custom_call.1} parent=11 // pred_region
          _
        $region32: #{tpu_custom_call.1} parent=11 // pred_fallthru
          _
        // Predicated region
        $region33: #{tpu_custom_call.1} parent=11 // pred_check
          %p250 = pneg %p173
        $region34: #{tpu_custom_call.1} parent=11 // pred_check_branch
          %252 = sbr.rel (%p250) target = $region36
        $region35: #{tpu_custom_call.1} parent=11 // pred_region
          _
        $region36: #{tpu_custom_call.1} parent=11 // pred_fallthru
          _
        // Predicated region
        $region37: #{tpu_custom_call.1} parent=11 // pred_check
          %p253 = pneg %p194
        $region38: #{tpu_custom_call.1} parent=11 // pred_check_branch
          %255 = sbr.rel (%p253) target = $region40
        $region39: #{tpu_custom_call.1} parent=11 // pred_region
          %257 = vsyncadd [#allocation7], 0
          %s258 = sshll.u32 %s7, 4
          %s259 = int_to_ptr.hbm [resolvable:$true] %s258
          %s260 = sshll.u32 [#allocation6], 4
          %s261 = int_to_ptr.vmem [resolvable:$true] %s260
          %266 = dma.hbm_to_vmem [thread:$0]  %s259, 3584, %s261, [#allocation7], 256, 256, 16
        $region40: #{tpu_custom_call.1} parent=11 // pred_fallthru
          _
      $region12: #{tpu_custom_call.1} parent=5 // pred_fallthru
        _
      %p267 = scmp.lt.s32.totalorder %s21, 2
      // Predicated region
      $region41: #{tpu_custom_call.1} parent=5 // pred_check
        %p268 = pneg %p267
      $region42: #{tpu_custom_call.1} parent=5 // pred_check_branch
        %270 = sbr.rel (%p268) target = $region44
      $region43: #{tpu_custom_call.1} parent=5 // pred_region
        // Predicated region
        $region45: #{tpu_custom_call.1} parent=43 // pred_check
          %p271 = pneg %p41
        $region46: #{tpu_custom_call.1} parent=43 // pred_check_branch
          %273 = sbr.rel (%p271) target = $region48
        $region47: #{tpu_custom_call.1} parent=43 // pred_region
          %s274 = sand.u32 %s31, 1
          %s275 = scalar_lea.sflag [#allocation4], %s274
          %s276 = sand.u32 %s31, 1
          %s277 = smul.addr %s276, 8
          %s278 = scalar_lea.vmem [#allocation3], %s277
          %280 = vsyncadd %s275, 0
          %s281 = smul.addr %s21, 2
          %s282 = smul.addr %s281, 4
          %s283 = scalar_lea.hbm %s0, %s282
          %s285 = sshll.u32 %s283, 4
          %s286 = int_to_ptr.hbm [resolvable:$true] %s285
          %s287 = sshll.u32 %s278, 4
          %s288 = int_to_ptr.vmem [resolvable:$true] %s287
          %290 = dma.hbm_to_vmem [thread:$0]  %s286, 128, %s288, %s275
        $region48: #{tpu_custom_call.1} parent=43 // pred_fallthru
          _
      $region44: #{tpu_custom_call.1} parent=5 // pred_fallthru
        _
      %p291 = scmp.le.s32.totalorder 1, %s21
      %p292 = scmp.lt.s32.totalorder %s21, 3
      %p293 = pnand %p291, %p292
      %p294 = pneg %p293
      // Predicated region
      $region49: #{tpu_custom_call.1} parent=5 // pred_check
        _
      $region50: #{tpu_custom_call.1} parent=5 // pred_check_branch
        %296 = sbr.rel (%p293) target = $region52
      $region51: #{tpu_custom_call.1} parent=5 // pred_region
        %s297 = ssub.s32 %s21, 1
        %s298 = sand.u32 %s34, 1
        %s299 = scalar_lea.sflag [#allocation4], %s298
        %s300 = sand.u32 %s34, 1
        %s301 = smul.addr %s300, 8
        %s302 = scalar_lea.vmem [#allocation3], %s301
        // Predicated region
        $region53: #{tpu_custom_call.1} parent=51 // pred_check
          %p303 = pneg %p47
        $region54: #{tpu_custom_call.1} parent=51 // pred_check_branch
          %305 = sbr.rel (%p303) target = $region56
        $region55: #{tpu_custom_call.1} parent=51 // pred_region
          %307 = dma.done %s299, 128
        $region56: #{tpu_custom_call.1} parent=51 // pred_fallthru
          _
        // Predicated region
        $region57: #{tpu_custom_call.1} parent=51 // pred_check
          %p308 = pneg %p194
        $region58: #{tpu_custom_call.1} parent=51 // pred_check_branch
          %310 = sbr.rel (%p308) target = $region60
        $region59: #{tpu_custom_call.1} parent=51 // pred_region
          %312 = dma.done [#allocation7], 3584
        $region60: #{tpu_custom_call.1} parent=51 // pred_fallthru
          _
        %s313 = sand.u32 %s34, 1
        %s314 = scalar_lea.sflag [#allocation4], %s313
        %s315 = sand.u32 %s34, 1
        %s316 = smul.addr %s315, 8
        %s317 = scalar_lea.vmem [#allocation3], %s316
        %p318 = pneg %p47
        %p319 = pneg %p44
        %p320 = pneg %p68
        %p321 = pneg %p65
        %p322 = pneg %p89
        %p323 = pneg %p86
        %p324 = pneg %p110
        %p325 = pneg %p107
        %p326 = pneg %p131
        %p327 = pneg %p128
        %p328 = pneg %p152
        %p329 = pneg %p149
        %p330 = pneg %p173
        %p331 = pneg %p170
        %p332 = pneg %p194
        %p333 = pneg %p191
        %p334 = pneg %p220
        %p335 = pneg %p217
        %s336 = sand.u32 %s207, 1
        %s337 = scalar_lea.sflag [#allocation5], %s336
        %s338 = sand.u32 %s207, 1
        %s339 = smul.addr %s338, 8
        %s340 = scalar_lea.vmem [#allocation8], %s339
        %v341 = vld [vmem:[%s302] sm:$0xff]
        %v342 = vld [vmem:[#allocation6] sm:$0xff]
        %v343 = vld [vmem:[#allocation6 + $0x8] sm:$0xff]
        %v344 = vld [vmem:[#allocation6 + $0x10] sm:$0xff]
        %v345 = vld [vmem:[#allocation6 + $0x18] sm:$0xff]
        %v346 = vld [vmem:[#allocation6 + $0x20] sm:$0xff]
        %v347 = vld [vmem:[#allocation6 + $0x28] sm:$0xff]
        %v348 = vld [vmem:[#allocation6 + $0x30] sm:$0xff]
        %v349 = vld [vmem:[#allocation6 + $0x38] sm:$0xff]
        %v350 = vld [vmem:[#allocation6 + $0x40] sm:$0xff]
        %v351 = vld [vmem:[#allocation6 + $0x48] sm:$0xff]
        %v352 = vld [vmem:[#allocation6 + $0x50] sm:$0xff]
        %v353 = vld [vmem:[#allocation6 + $0x58] sm:$0xff]
        %v354 = vld [vmem:[#allocation6 + $0x60] sm:$0xff]
        %v355 = vld [vmem:[#allocation6 + $0x68] sm:$0xff]
        %v356 = vld [vmem:[#allocation6 + $0x70] sm:$0xff]
        %v357 = vld [vmem:[#allocation6 + $0x78] sm:$0xff]
        %v358 = vld [vmem:[#allocation6 + $0x80] sm:$0xff]
        %v359 = vld [vmem:[#allocation6 + $0x88] sm:$0xff]
        %v360 = vld [vmem:[#allocation6 + $0x90] sm:$0xff]
        %v361 = vld [vmem:[#allocation6 + $0x98] sm:$0xff]
        %v362 = vld [vmem:[#allocation6 + $0xa0] sm:$0xff]
        %v363 = vld [vmem:[#allocation6 + $0xa8] sm:$0xff]
        %v364 = vld [vmem:[#allocation6 + $0xb0] sm:$0xff]
        %v365 = vld [vmem:[#allocation6 + $0xb8] sm:$0xff]
        %v366 = vld [vmem:[#allocation6 + $0xc0] sm:$0xff]
        %v367 = vld [vmem:[#allocation6 + $0xc8] sm:$0xff]
        %v368 = vld [vmem:[#allocation6 + $0xd0] sm:$0xf]
        %v369 = vld [vmem:[#allocation6 + $0xd8] sm:$0xf]
        %v370 = vld [vmem:[%s1] sm:$0xf]
        %372 = vset.pattern.permute.xlu0 0
        %373 = vperm.xlu0 %372, %v370
        %v374 = vpop.permute.xlu0 %373
        %v376 = vunpack.c.l.s4 839922192
        %v377 = vunpack.c.0.s8 %v376
        %v378 = vperm.slane %v374, %v377
        %v380 = vmul.f32 %v341, %v378
        %v381 = vld [vmem:[%s2] sm:$0xf]
        %383 = vset.pattern.permute.xlu0 0
        %384 = vperm.xlu0 %383, %v381
        %v385 = vpop.permute.xlu0 %384
        %v387 = vunpack.c.l.s4 839922192
        %v388 = vunpack.c.0.s8 %v387
        %v389 = vperm.slane %v385, %v388
        %v391 = vadd.f32 %v380, %v389
        %vm392 = vcmp.ge.f32.partialorder %v391, 0.0
        %v393 = vmul.f32 %v391, 0.01
        %v394 = vsel %vm392, %v391, %v393
        %396 = vst [vmem:[#allocation1] ss:$2 sm:$0xff] %v394
        %v397 = vld.sshfl [vmem:[#allocation1] sm:$0xff pattern:$0x75316420]
        %v398 = vld.sshfl [vmem:[#allocation1 + $0x8] sm:$0xff pattern:$0x75316420]
        %401 = vrot.lane.b32.xlu0 %v397, 73
        %v402 = vpop.permute.xlu0 %401
        %403 = vrot.lane.b32.xlu0 %v398, 73
        %v404 = vpop.permute.xlu0 %403
        %v405 = vlaneseq
        %v406 = vand.u32 %v405, 127
        %vm407 = vcmp.lt.s32.totalorder %v406, 73
        %v408 = vsel %vm407, %v402, %v404
        %v409 = vsel %vm407, %v404, %v402
        %410 = vst [vmem:[#allocation2] sm:$0xf] %v409
        %411 = vst [vmem:[#allocation2 + $0x8] sm:$0xf] %v408
        %412 = vst [vmem:[#allocation1] ss:$2 sm:$0xff] %v394
        %v413 = vld.sshfl [vmem:[#allocation1] sm:$0xff pattern:$0x75316420]
        %v414 = vld.sshfl [vmem:[#allocation1 + $0x8] sm:$0xff pattern:$0x75316420]
        %417 = vrot.lane.b32.xlu0 %v413, 72
        %v418 = vpop.permute.xlu0 %417
        %419 = vrot.lane.b32.xlu0 %v414, 72
        %v420 = vpop.permute.xlu0 %419
        %vm421 = vcmp.lt.s32.totalorder %v406, 72
        %v422 = vsel %vm421, %v418, %v420
        %v423 = vsel %vm421, %v420, %v418
        %v426 = vrot.slane %v423, 4
        %v427 = vrot.slane %v422, 4
        %430 = vst [vmem:[#allocation2] sm:$0xf0] %v426
        %431 = vst [vmem:[#allocation2 + $0x8] sm:$0xf0] %v427
        %432 = vst [vmem:[#allocation1] ss:$2 sm:$0xff] %v394
        %v433 = vld.sshfl [vmem:[#allocation1] sm:$0xff pattern:$0x75316420]
        %v434 = vld.sshfl [vmem:[#allocation1 + $0x8] sm:$0xff pattern:$0x75316420]
        %437 = vrot.lane.b32.xlu0 %v433, 71
        %v438 = vpop.permute.xlu0 %437
        %439 = vrot.lane.b32.xlu0 %v434, 71
        %v440 = vpop.permute.xlu0 %439
        %vm441 = vcmp.lt.s32.totalorder %v406, 71
        %v442 = vsel %vm441, %v438, %v440
        %v443 = vsel %vm441, %v440, %v438
        %444 = vst [vmem:[#allocation2 + $0x10] sm:$0xf] %v443
        %445 = vst [vmem:[#allocation2 + $0x18] sm:$0xf] %v442
        %446 = vst [vmem:[#allocation1] ss:$2 sm:$0xff] %v394
        %v447 = vld.sshfl [vmem:[#allocation1] sm:$0xff pattern:$0x75316420]
        %v448 = vld.sshfl [vmem:[#allocation1 + $0x8] sm:$0xff pattern:$0x75316420]
        %451 = vrot.lane.b32.xlu0 %v447, 65
        %v452 = vpop.permute.xlu0 %451
        %453 = vrot.lane.b32.xlu0 %v448, 65
        %v454 = vpop.permute.xlu0 %453
        %vm455 = vcmp.lt.s32.totalorder %v406, 65
        %v456 = vsel %vm455, %v452, %v454
        %v457 = vsel %vm455, %v454, %v452
        %v460 = vrot.slane %v457, 4
        %v461 = vrot.slane %v456, 4
        %464 = vst [vmem:[#allocation2 + $0x10] sm:$0xf0] %v460
        %465 = vst [vmem:[#allocation2 + $0x18] sm:$0xf0] %v461
        %466 = vst [vmem:[#allocation1] ss:$2 sm:$0xff] %v394
        %v467 = vld.sshfl [vmem:[#allocation1] sm:$0xff pattern:$0x75316420]
        %v468 = vld.sshfl [vmem:[#allocation1 + $0x8] sm:$0xff pattern:$0x75316420]
        %471 = vrot.lane.b32.xlu0 %v467, 64
        %v472 = vpop.permute.xlu0 %471
        %473 = vrot.lane.b32.xlu0 %v468, 64
        %v474 = vpop.permute.xlu0 %473
        %vm475 = vcmp.lt.s32.totalorder %v406, 64
        %v476 = vsel %vm475, %v472, %v474
        %v477 = vsel %vm475, %v474, %v472
        %478 = vst [vmem:[#allocation2 + $0x20] sm:$0xf] %v477
        %479 = vst [vmem:[#allocation2 + $0x28] sm:$0xf] %v476
        %480 = vst [vmem:[#allocation1] ss:$2 sm:$0xff] %v394
        %v481 = vld.sshfl [vmem:[#allocation1] sm:$0xff pattern:$0x75316420]
        %v482 = vld.sshfl [vmem:[#allocation1 + $0x8] sm:$0xff pattern:$0x75316420]
        %485 = vrot.lane.b32.xlu0 %v481, 63
        %v486 = vpop.permute.xlu0 %485
        %487 = vrot.lane.b32.xlu0 %v482, 63
        %v488 = vpop.permute.xlu0 %487
        %vm489 = vcmp.lt.s32.totalorder %v406, 63
        %v490 = vsel %vm489, %v486, %v488
        %v491 = vsel %vm489, %v488, %v486
        %v494 = vrot.slane %v491, 4
        %v495 = vrot.slane %v490, 4
        %498 = vst [vmem:[#allocation2 + $0x20] sm:$0xf0] %v494
        %499 = vst [vmem:[#allocation2 + $0x28] sm:$0xf0] %v495
        %500 = vst [vmem:[#allocation1] ss:$2 sm:$0xff] %v394
        %v501 = vld.sshfl [vmem:[#allocation1] sm:$0xff pattern:$0x75316420]
        %v502 = vld.sshfl [vmem:[#allocation1 + $0x8] sm:$0xff pattern:$0x75316420]
        %505 = vrot.lane.b32.xlu0 %v501, 57
        %v506 = vpop.permute.xlu0 %505
        %507 = vrot.lane.b32.xlu0 %v502, 57
        %v508 = vpop.permute.xlu0 %507
        %vm509 = vcmp.lt.s32.totalorder %v406, 57
        %v510 = vsel %vm509, %v506, %v508
        %v511 = vsel %vm509, %v508, %v506
        %512 = vst [vmem:[#allocation2 + $0x30] sm:$0xf] %v511
        %513 = vst [vmem:[#allocation2 + $0x38] sm:$0xf] %v510
        %514 = vst [vmem:[#allocation1] ss:$2 sm:$0xff] %v394
        %v515 = vld.sshfl [vmem:[#allocation1] sm:$0xff pattern:$0x75316420]
        %v516 = vld.sshfl [vmem:[#allocation1 + $0x8] sm:$0xff pattern:$0x75316420]
        %519 = vrot.lane.b32.xlu0 %v515, 56
        %v520 = vpop.permute.xlu0 %519
        %521 = vrot.lane.b32.xlu0 %v516, 56
        %v522 = vpop.permute.xlu0 %521
        %vm523 = vcmp.lt.s32.totalorder %v406, 56
        %v524 = vsel %vm523, %v520, %v522
        %v525 = vsel %vm523, %v522, %v520
        %v528 = vrot.slane %v525, 4
        %v529 = vrot.slane %v524, 4
        %532 = vst [vmem:[#allocation2 + $0x30] sm:$0xf0] %v528
        %533 = vst [vmem:[#allocation2 + $0x38] sm:$0xf0] %v529
        %534 = vst [vmem:[#allocation1] ss:$2 sm:$0xff] %v394
        %v535 = vld.sshfl [vmem:[#allocation1] sm:$0xff pattern:$0x75316420]
        %v536 = vld.sshfl [vmem:[#allocation1 + $0x8] sm:$0xff pattern:$0x75316420]
        %539 = vrot.lane.b32.xlu0 %v535, 55
        %v540 = vpop.permute.xlu0 %539
        %541 = vrot.lane.b32.xlu0 %v536, 55
        %v542 = vpop.permute.xlu0 %541
        %vm543 = vcmp.lt.s32.totalorder %v406, 55
        %v544 = vsel %vm543, %v540, %v542
        %v545 = vsel %vm543, %v542, %v540
        %546 = vst [vmem:[#allocation2 + $0x40] sm:$0xf] %v545
        %547 = vst [vmem:[#allocation2 + $0x48] sm:$0xf] %v544
        %548 = vst [vmem:[#allocation1] ss:$2 sm:$0xff] %v394
        %v549 = vld.sshfl [vmem:[#allocation1] sm:$0xff pattern:$0x75316420]
        %v550 = vld.sshfl [vmem:[#allocation1 + $0x8] sm:$0xff pattern:$0x75316420]
        %553 = vrot.lane.b32.xlu0 %v549, 9
        %v554 = vpop.permute.xlu0 %553
        %555 = vrot.lane.b32.xlu0 %v550, 9
        %v556 = vpop.permute.xlu0 %555
        %vm557 = vcmp.lt.s32.totalorder %v406, 9
        %v558 = vsel %vm557, %v554, %v556
        %v559 = vsel %vm557, %v556, %v554
        %v562 = vrot.slane %v559, 4
        %v563 = vrot.slane %v558, 4
        %566 = vst [vmem:[#allocation2 + $0x40] sm:$0xf0] %v562
        %567 = vst [vmem:[#allocation2 + $0x48] sm:$0xf0] %v563
        %568 = vst [vmem:[#allocation1] ss:$2 sm:$0xff] %v394
        %v569 = vld.sshfl [vmem:[#allocation1] sm:$0xff pattern:$0x75316420]
        %v570 = vld.sshfl [vmem:[#allocation1 + $0x8] sm:$0xff pattern:$0x75316420]
        %573 = vrot.lane.b32.xlu0 %v569, 8
        %v574 = vpop.permute.xlu0 %573
        %575 = vrot.lane.b32.xlu0 %v570, 8
        %v576 = vpop.permute.xlu0 %575
        %vm577 = vcmp.lt.s32.totalorder %v406, 8
        %v578 = vsel %vm577, %v574, %v576
        %v579 = vsel %vm577, %v576, %v574
        %580 = vst [vmem:[#allocation2 + $0x50] sm:$0xf] %v579
        %581 = vst [vmem:[#allocation2 + $0x58] sm:$0xf] %v578
        %582 = vst [vmem:[#allocation1] ss:$2 sm:$0xff] %v394
        %v583 = vld.sshfl [vmem:[#allocation1] sm:$0xff pattern:$0x75316420]
        %v584 = vld.sshfl [vmem:[#allocation1 + $0x8] sm:$0xff pattern:$0x75316420]
        %587 = vrot.lane.b32.xlu0 %v583, 7
        %v588 = vpop.permute.xlu0 %587
        %589 = vrot.lane.b32.xlu0 %v584, 7
        %v590 = vpop.permute.xlu0 %589
        %vm591 = vcmp.lt.s32.totalorder %v406, 7
        %v592 = vsel %vm591, %v588, %v590
        %v593 = vsel %vm591, %v590, %v588
        %v596 = vrot.slane %v593, 4
        %v597 = vrot.slane %v592, 4
        %600 = vst [vmem:[#allocation2 + $0x50] sm:$0xf0] %v596
        %601 = vst [vmem:[#allocation2 + $0x58] sm:$0xf0] %v597
        %602 = vst [vmem:[#allocation1] ss:$2 sm:$0xff] %v394
        %v603 = vld.sshfl [vmem:[#allocation1] sm:$0xff pattern:$0x75316420]
        %v604 = vld.sshfl [vmem:[#allocation1 + $0x8] sm:$0xff pattern:$0x75316420]
        %607 = vrot.lane.b32.xlu0 %v603, 1
        %v608 = vpop.permute.xlu0 %607
        %609 = vrot.lane.b32.xlu0 %v604, 1
        %v610 = vpop.permute.xlu0 %609
        %vm611 = vcmp.lt.s32.totalorder %v406, 1
        %v612 = vsel %vm611, %v608, %v610
        %v613 = vsel %vm611, %v610, %v608
        %614 = vst [vmem:[#allocation2 + $0x60] sm:$0xf] %v613
        %615 = vst [vmem:[#allocation2 + $0x68] sm:$0xf] %v612
        %s616 = scalar_lea.vmem [#allocation1], 1
        %617 = vst [vmem:[%s616] ss:$2 sm:$0xff] %v394
        %v618 = vld.sshfl [vmem:[#allocation1] sm:$0xff pattern:$0x75316420]
        %v619 = vld.sshfl [vmem:[#allocation1 + $0x8] sm:$0xff pattern:$0x75316420]
        %622 = vst [vmem:[#allocation2 + $0x60] sm:$0xf0] %v618
        %623 = vst [vmem:[#allocation2 + $0x68] sm:$0xf0] %v619
        %624 = vst [vmem:[#allocation1] ss:$2 sm:$0xff] %v394
        %v625 = vld.sshfl [vmem:[#allocation1] sm:$0xff pattern:$0x75316420]
        %v626 = vld.sshfl [vmem:[#allocation1 + $0x8] sm:$0xff pattern:$0x75316420]
        %629 = vrot.lane.b32.xlu0 %v625, 127
        %v630 = vpop.permute.xlu0 %629
        %631 = vrot.lane.b32.xlu0 %v626, 127
        %v632 = vpop.permute.xlu0 %631
        %vm633 = vcmp.lt.s32.totalorder %v406, 127
        %v634 = vsel %vm633, %v630, %v632
        %v635 = vsel %vm633, %v632, %v630
        %636 = vst [vmem:[#allocation2 + $0x70] sm:$0xf] %v634
        %637 = vst [vmem:[#allocation2 + $0x78] sm:$0xf] %v635
        %638 = vst [vmem:[#allocation1] ss:$2 sm:$0xff] %v394
        %v639 = vld.sshfl [vmem:[#allocation1] sm:$0xff pattern:$0x75316420]
        %v640 = vld.sshfl [vmem:[#allocation1 + $0x8] sm:$0xff pattern:$0x75316420]
        %643 = vrot.lane.b32.xlu0 %v639, 121
        %v644 = vpop.permute.xlu0 %643
        %645 = vrot.lane.b32.xlu0 %v640, 121
        %v646 = vpop.permute.xlu0 %645
        %vm647 = vcmp.lt.s32.totalorder %v406, 121
        %v648 = vsel %vm647, %v644, %v646
        %v649 = vsel %vm647, %v646, %v644
        %v652 = vrot.slane %v648, 4
        %v653 = vrot.slane %v649, 4
        %656 = vst [vmem:[#allocation2 + $0x70] sm:$0xf0] %v652
        %657 = vst [vmem:[#allocation2 + $0x78] sm:$0xf0] %v653
        %658 = vst [vmem:[#allocation1] ss:$2 sm:$0xff] %v394
        %v659 = vld.sshfl [vmem:[#allocation1] sm:$0xff pattern:$0x75316420]
        %v660 = vld.sshfl [vmem:[#allocation1 + $0x8] sm:$0xff pattern:$0x75316420]
        %663 = vrot.lane.b32.xlu0 %v659, 120
        %v664 = vpop.permute.xlu0 %663
        %665 = vrot.lane.b32.xlu0 %v660, 120
        %v666 = vpop.permute.xlu0 %665
        %vm667 = vcmp.lt.s32.totalorder %v406, 120
        %v668 = vsel %vm667, %v664, %v666
        %v669 = vsel %vm667, %v666, %v664
        %670 = vst [vmem:[#allocation2 + $0x80] sm:$0xf] %v668
        %671 = vst [vmem:[#allocation2 + $0x88] sm:$0xf] %v669
        %672 = vst [vmem:[#allocation1] ss:$2 sm:$0xff] %v394
        %v673 = vld.sshfl [vmem:[#allocation1] sm:$0xff pattern:$0x75316420]
        %v674 = vld.sshfl [vmem:[#allocation1 + $0x8] sm:$0xff pattern:$0x75316420]
        %677 = vrot.lane.b32.xlu0 %v673, 119
        %v678 = vpop.permute.xlu0 %677
        %679 = vrot.lane.b32.xlu0 %v674, 119
        %v680 = vpop.permute.xlu0 %679
        %vm681 = vcmp.lt.s32.totalorder %v406, 119
        %v682 = vsel %vm681, %v678, %v680
        %v683 = vsel %vm681, %v680, %v678
        %v686 = vrot.slane %v682, 4
        %v687 = vrot.slane %v683, 4
        %690 = vst [vmem:[#allocation2 + $0x80] sm:$0xf0] %v686
        %691 = vst [vmem:[#allocation2 + $0x88] sm:$0xf0] %v687
        %692 = vst [vmem:[#allocation1] ss:$2 sm:$0xff] %v394
        %v693 = vld.sshfl [vmem:[#allocation1] sm:$0xff pattern:$0x75316420]
        %v694 = vld.sshfl [vmem:[#allocation1 + $0x8] sm:$0xff pattern:$0x75316420]
        %697 = vrot.lane.b32.xlu0 %v693, 73
        %v698 = vpop.permute.xlu0 %697
        %699 = vrot.lane.b32.xlu0 %v694, 73
        %v700 = vpop.permute.xlu0 %699
        %v701 = vsel %vm407, %v698, %v700
        %v702 = vsel %vm407, %v700, %v698
        %703 = vst [vmem:[#allocation2 + $0x90] sm:$0xf] %v701
        %704 = vst [vmem:[#allocation2 + $0x98] sm:$0xf] %v702
        %705 = vst [vmem:[#allocation1] ss:$2 sm:$0xff] %v394
        %v706 = vld.sshfl [vmem:[#allocation1] sm:$0xff pattern:$0x75316420]
        %v707 = vld.sshfl [vmem:[#allocation1 + $0x8] sm:$0xff pattern:$0x75316420]
        %710 = vrot.lane.b32.xlu0 %v706, 72
        %v711 = vpop.permute.xlu0 %710
        %712 = vrot.lane.b32.xlu0 %v707, 72
        %v713 = vpop.permute.xlu0 %712
        %v714 = vsel %vm421, %v711, %v713
        %v715 = vsel %vm421, %v713, %v711
        %v718 = vrot.slane %v714, 4
        %v719 = vrot.slane %v715, 4
        %722 = vst [vmem:[#allocation2 + $0x90] sm:$0xf0] %v718
        %723 = vst [vmem:[#allocation2 + $0x98] sm:$0xf0] %v719
        %724 = vst [vmem:[#allocation1] ss:$2 sm:$0xff] %v394
        %v725 = vld.sshfl [vmem:[#allocation1] sm:$0xff pattern:$0x75316420]
        %v726 = vld.sshfl [vmem:[#allocation1 + $0x8] sm:$0xff pattern:$0x75316420]
        %729 = vrot.lane.b32.xlu0 %v725, 71
        %v730 = vpop.permute.xlu0 %729
        %731 = vrot.lane.b32.xlu0 %v726, 71
        %v732 = vpop.permute.xlu0 %731
        %v733 = vsel %vm441, %v730, %v732
        %v734 = vsel %vm441, %v732, %v730
        %735 = vst [vmem:[#allocation2 + $0xa0] sm:$0xf] %v733
        %736 = vst [vmem:[#allocation2 + $0xa8] sm:$0xf] %v734
        %737 = vst [vmem:[#allocation1] ss:$2 sm:$0xff] %v394
        %v738 = vld.sshfl [vmem:[#allocation1] sm:$0xff pattern:$0x75316420]
        %v739 = vld.sshfl [vmem:[#allocation1 + $0x8] sm:$0xff pattern:$0x75316420]
        %742 = vrot.lane.b32.xlu0 %v738, 65
        %v743 = vpop.permute.xlu0 %742
        %744 = vrot.lane.b32.xlu0 %v739, 65
        %v745 = vpop.permute.xlu0 %744
        %v746 = vsel %vm455, %v743, %v745
        %v747 = vsel %vm455, %v745, %v743
        %v750 = vrot.slane %v746, 4
        %v751 = vrot.slane %v747, 4
        %754 = vst [vmem:[#allocation2 + $0xa0] sm:$0xf0] %v750
        %755 = vst [vmem:[#allocation2 + $0xa8] sm:$0xf0] %v751
        %756 = vst [vmem:[#allocation1] ss:$2 sm:$0xff] %v394
        %v757 = vld.sshfl [vmem:[#allocation1] sm:$0xff pattern:$0x75316420]
        %v758 = vld.sshfl [vmem:[#allocation1 + $0x8] sm:$0xff pattern:$0x75316420]
        %761 = vrot.lane.b32.xlu0 %v757, 64
        %v762 = vpop.permute.xlu0 %761
        %763 = vrot.lane.b32.xlu0 %v758, 64
        %v764 = vpop.permute.xlu0 %763
        %v765 = vsel %vm475, %v762, %v764
        %v766 = vsel %vm475, %v764, %v762
        %767 = vst [vmem:[#allocation2 + $0xb0] sm:$0xf] %v765
        %768 = vst [vmem:[#allocation2 + $0xb8] sm:$0xf] %v766
        %769 = vst [vmem:[#allocation1] ss:$2 sm:$0xff] %v394
        %v770 = vld.sshfl [vmem:[#allocation1] sm:$0xff pattern:$0x75316420]
        %v771 = vld.sshfl [vmem:[#allocation1 + $0x8] sm:$0xff pattern:$0x75316420]
        %774 = vrot.lane.b32.xlu0 %v770, 63
        %v775 = vpop.permute.xlu0 %774
        %776 = vrot.lane.b32.xlu0 %v771, 63
        %v777 = vpop.permute.xlu0 %776
        %v778 = vsel %vm489, %v775, %v777
        %v779 = vsel %vm489, %v777, %v775
        %v782 = vrot.slane %v778, 4
        %v783 = vrot.slane %v779, 4
        %786 = vst [vmem:[#allocation2 + $0xb0] sm:$0xf0] %v782
        %787 = vst [vmem:[#allocation2 + $0xb8] sm:$0xf0] %v783
        %788 = vst [vmem:[#allocation1] ss:$2 sm:$0xff] %v394
        %v789 = vld.sshfl [vmem:[#allocation1] sm:$0xff pattern:$0x75316420]
        %v790 = vld.sshfl [vmem:[#allocation1 + $0x8] sm:$0xff pattern:$0x75316420]
        %793 = vrot.lane.b32.xlu0 %v789, 57
        %v794 = vpop.permute.xlu0 %793
        %795 = vrot.lane.b32.xlu0 %v790, 57
        %v796 = vpop.permute.xlu0 %795
        %v797 = vsel %vm509, %v794, %v796
        %v798 = vsel %vm509, %v796, %v794
        %799 = vst [vmem:[#allocation2 + $0xc0] sm:$0xf] %v797
        %800 = vst [vmem:[#allocation2 + $0xc8] sm:$0xf] %v798
        %801 = vst [vmem:[#allocation1] ss:$2 sm:$0xff] %v394
        %v802 = vld.sshfl [vmem:[#allocation1] sm:$0xff pattern:$0x75316420]
        %v803 = vld.sshfl [vmem:[#allocation1 + $0x8] sm:$0xff pattern:$0x75316420]
        %806 = vrot.lane.b32.xlu0 %v802, 56
        %v807 = vpop.permute.xlu0 %806
        %808 = vrot.lane.b32.xlu0 %v803, 56
        %v809 = vpop.permute.xlu0 %808
        %v810 = vsel %vm523, %v807, %v809
        %v811 = vsel %vm523, %v809, %v807
        %v814 = vrot.slane %v810, 4
        %v815 = vrot.slane %v811, 4
        %818 = vst [vmem:[#allocation2 + $0xc0] sm:$0xf0] %v814
        %819 = vst [vmem:[#allocation2 + $0xc8] sm:$0xf0] %v815
        %820 = vst [vmem:[#allocation1] ss:$2 sm:$0xff] %v394
        %v821 = vld.sshfl [vmem:[#allocation1] sm:$0xff pattern:$0x75316420]
        %v822 = vld.sshfl [vmem:[#allocation1 + $0x8] sm:$0xff pattern:$0x75316420]
        %825 = vrot.lane.b32.xlu0 %v821, 55
        %v826 = vpop.permute.xlu0 %825
        %827 = vrot.lane.b32.xlu0 %v822, 55
        %v828 = vpop.permute.xlu0 %827
        %v829 = vsel %vm543, %v826, %v828
        %v830 = vsel %vm543, %v828, %v826
        %831 = vst [vmem:[#allocation2 + $0xd0] sm:$0xf] %v829
        %832 = vst [vmem:[#allocation2 + $0xd8] sm:$0xf] %v830
        %v833 = vld [vmem:[#allocation2] sm:$0xff]
        %v834 = vld [vmem:[#allocation2 + $0x8] sm:$0xff]
        %v835 = vld [vmem:[#allocation2 + $0x10] sm:$0xff]
        %v836 = vld [vmem:[#allocation2 + $0x18] sm:$0xff]
        %v837 = vld [vmem:[#allocation2 + $0x20] sm:$0xff]
        %v838 = vld [vmem:[#allocation2 + $0x28] sm:$0xff]
        %v839 = vld [vmem:[#allocation2 + $0x30] sm:$0xff]
        %v840 = vld [vmem:[#allocation2 + $0x38] sm:$0xff]
        %v841 = vld [vmem:[#allocation2 + $0x40] sm:$0xff]
        %v842 = vld [vmem:[#allocation2 + $0x48] sm:$0xff]
        %v843 = vld [vmem:[#allocation2 + $0x50] sm:$0xff]
        %v844 = vld [vmem:[#allocation2 + $0x58] sm:$0xff]
        %v845 = vld [vmem:[#allocation2 + $0x60] sm:$0xff]
        %v846 = vld [vmem:[#allocation2 + $0x68] sm:$0xff]
        %v847 = vld [vmem:[#allocation2 + $0x70] sm:$0xff]
        %v848 = vld [vmem:[#allocation2 + $0x78] sm:$0xff]
        %v849 = vld [vmem:[#allocation2 + $0x80] sm:$0xff]
        %v850 = vld [vmem:[#allocation2 + $0x88] sm:$0xff]
        %v851 = vld [vmem:[#allocation2 + $0x90] sm:$0xff]
        %v852 = vld [vmem:[#allocation2 + $0x98] sm:$0xff]
        %v853 = vld [vmem:[#allocation2 + $0xa0] sm:$0xff]
        %v854 = vld [vmem:[#allocation2 + $0xa8] sm:$0xff]
        %v855 = vld [vmem:[#allocation2 + $0xb0] sm:$0xff]
        %v856 = vld [vmem:[#allocation2 + $0xb8] sm:$0xff]
        %v857 = vld [vmem:[#allocation2 + $0xc0] sm:$0xff]
        %v858 = vld [vmem:[#allocation2 + $0xc8] sm:$0xff]
        %v859 = vld [vmem:[#allocation2 + $0xd0] sm:$0xf]
        %v860 = vld [vmem:[#allocation2 + $0xd8] sm:$0xf]
        %v861 = vmul.f32 %v833, %v342
        %v862 = vmul.f32 %v834, %v343
        %v863 = vmul.f32 %v835, %v344
        %v864 = vmul.f32 %v836, %v345
        %v865 = vmul.f32 %v837, %v346
        %v866 = vmul.f32 %v838, %v347
        %v867 = vmul.f32 %v839, %v348
        %v868 = vmul.f32 %v840, %v349
        %v869 = vmul.f32 %v841, %v350
        %v870 = vmul.f32 %v842, %v351
        %v871 = vmul.f32 %v843, %v352
        %v872 = vmul.f32 %v844, %v353
        %v873 = vmul.f32 %v845, %v354
        %v874 = vmul.f32 %v846, %v355
        %v875 = vmul.f32 %v847, %v356
        %v876 = vmul.f32 %v848, %v357
        %v877 = vmul.f32 %v849, %v358
        %v878 = vmul.f32 %v850, %v359
        %v879 = vmul.f32 %v851, %v360
        %v880 = vmul.f32 %v852, %v361
        %v881 = vmul.f32 %v853, %v362
        %v882 = vmul.f32 %v854, %v363
        %v883 = vmul.f32 %v855, %v364
        %v884 = vmul.f32 %v856, %v365
        %v885 = vmul.f32 %v857, %v366
        %v886 = vmul.f32 %v858, %v367
        %v887 = vmul.f32 %v859, %v368
        %v888 = vmul.f32 %v860, %v369
        %v889 = vld [vmem:[%s5] sm:$0xf]
        %vm890 = vcmask 883712
        %v892 = vsel %vm890, %v889, 0
        %vm894 = vcmask 1043456
        %v896 = vsel %vm894, %v887, 0
        %v899 = vsel %vm894, %v888, 0
        %901 = vmatpush.msra.mxu0 0.0
        %902 = vmatpush.msra.mxu0 0.0
        %903 = vmatpush.msra.mxu0 %v896
        %904 = vmatpush.msra.mxu0 %v885
        %905 = vmatpush.msra.mxu0 %v883
        %906 = vmatpush.msra.mxu0 %v881
        %907 = vmatpush.msra.mxu0 %v879
        %908 = vmatpush.msra.mxu0 %v877
        %909 = vmatpush.msra.mxu0 %v875
        %910 = vmatpush.msra.mxu0 %v873
        %911 = vmatpush.msra.mxu0 %v871
        %912 = vmatpush.msra.mxu0 %v869
        %913 = vmatpush.msra.mxu0 %v867
        %914 = vmatpush.msra.mxu0 %v865
        %915 = vmatpush.msra.mxu0 %v863
        %916 = vmatpush.msra.mxu0 %v861
        %917 = vmatmul.f32.gmra.mxu0 %v892
        %v918 = vpop.f32.mrf.mxu0
        %v919 = vadd.f32 0.0, %v918
        %920 = vdwg.mxu0
        %921 = vmatpush.msra.mxu0 0.0
        %922 = vmatpush.msra.mxu0 0.0
        %923 = vmatpush.msra.mxu0 %v899
        %924 = vmatpush.msra.mxu0 %v886
        %925 = vmatpush.msra.mxu0 %v884
        %926 = vmatpush.msra.mxu0 %v882
        %927 = vmatpush.msra.mxu0 %v880
        %928 = vmatpush.msra.mxu0 %v878
        %929 = vmatpush.msra.mxu0 %v876
        %930 = vmatpush.msra.mxu0 %v874
        %931 = vmatpush.msra.mxu0 %v872
        %932 = vmatpush.msra.mxu0 %v870
        %933 = vmatpush.msra.mxu0 %v868
        %934 = vmatpush.msra.mxu0 %v866
        %935 = vmatpush.msra.mxu0 %v864
        %936 = vmatpush.msra.mxu0 %v862
        %937 = vmatmul.f32.gmra.mxu0 %v892
        %v938 = vpop.f32.mrf.mxu0
        %v939 = vadd.f32 0.0, %v938
        %940 = vdwg.mxu0
        %v941 = vld [vmem:[%s3] sm:$0xf]
        %943 = vset.pattern.permute.xlu0 0
        %944 = vperm.xlu0 %943, %v941
        %v945 = vpop.permute.xlu0 %944
        %v947 = vmul.f32 %v919, %v945
        %v948 = vmul.f32 %v939, %v945
        %v949 = vld [vmem:[%s4] sm:$0xf]
        %951 = vset.pattern.permute.xlu0 0
        %952 = vperm.xlu0 %951, %v949
        %v953 = vpop.permute.xlu0 %952
        %v955 = vadd.f32 %v947, %v953
        %v956 = vadd.f32 %v948, %v953
        %vm957 = vcmp.ge.f32.partialorder %v955, 0.0
        %vm958 = vcmp.ge.f32.partialorder %v956, 0.0
        %v959 = vmul.f32 %v955, 0.01
        %v960 = vmul.f32 %v956, 0.01
        %v961 = vsel %vm957, %v955, %v959
        %v962 = vsel %vm958, %v956, %v960
        %963 = vrot.lane.b32.xlu0 %v961, 73
        %v964 = vpop.permute.xlu0 %963
        %965 = vrot.lane.b32.xlu0 %v962, 73
        %v966 = vpop.permute.xlu0 %965
        %v967 = vsel %vm407, %v964, %v966
        %v968 = vsel %vm407, %v966, %v964
        %969 = vst [vmem:[#allocation2] sm:$0xf] %v968
        %970 = vst [vmem:[#allocation2 + $0x8] sm:$0xf] %v967
        %971 = vrot.lane.b32.xlu0 %v961, 72
        %v972 = vpop.permute.xlu0 %971
        %973 = vrot.lane.b32.xlu0 %v962, 72
        %v974 = vpop.permute.xlu0 %973
        %v975 = vsel %vm421, %v972, %v974
        %v976 = vsel %vm421, %v974, %v972
        %v979 = vrot.slane %v976, 4
        %v980 = vrot.slane %v975, 4
        %983 = vst [vmem:[#allocation2] sm:$0xf0] %v979
        %984 = vst [vmem:[#allocation2 + $0x8] sm:$0xf0] %v980
        %985 = vrot.lane.b32.xlu0 %v961, 71
        %v986 = vpop.permute.xlu0 %985
        %987 = vrot.lane.b32.xlu0 %v962, 71
        %v988 = vpop.permute.xlu0 %987
        %v989 = vsel %vm441, %v986, %v988
        %v990 = vsel %vm441, %v988, %v986
        %991 = vst [vmem:[#allocation2 + $0x10] sm:$0xf] %v990
        %992 = vst [vmem:[#allocation2 + $0x18] sm:$0xf] %v989
        %993 = vrot.lane.b32.xlu0 %v961, 65
        %v994 = vpop.permute.xlu0 %993
        %995 = vrot.lane.b32.xlu0 %v962, 65
        %v996 = vpop.permute.xlu0 %995
        %v997 = vsel %vm455, %v994, %v996
        %v998 = vsel %vm455, %v996, %v994
        %v1001 = vrot.slane %v998, 4
        %v1002 = vrot.slane %v997, 4
        %1005 = vst [vmem:[#allocation2 + $0x10] sm:$0xf0] %v1001
        %1006 = vst [vmem:[#allocation2 + $0x18] sm:$0xf0] %v1002
        %1007 = vrot.lane.b32.xlu0 %v961, 64
        %v1008 = vpop.permute.xlu0 %1007
        %1009 = vrot.lane.b32.xlu0 %v962, 64
        %v1010 = vpop.permute.xlu0 %1009
        %v1011 = vsel %vm475, %v1008, %v1010
        %v1012 = vsel %vm475, %v1010, %v1008
        %1013 = vst [vmem:[#allocation2 + $0x20] sm:$0xf] %v1012
        %1014 = vst [vmem:[#allocation2 + $0x28] sm:$0xf] %v1011
        %1015 = vrot.lane.b32.xlu0 %v961, 63
        %v1016 = vpop.permute.xlu0 %1015
        %1017 = vrot.lane.b32.xlu0 %v962, 63
        %v1018 = vpop.permute.xlu0 %1017
        %v1019 = vsel %vm489, %v1016, %v1018
        %v1020 = vsel %vm489, %v1018, %v1016
        %v1023 = vrot.slane %v1020, 4
        %v1024 = vrot.slane %v1019, 4
        %1027 = vst [vmem:[#allocation2 + $0x20] sm:$0xf0] %v1023
        %1028 = vst [vmem:[#allocation2 + $0x28] sm:$0xf0] %v1024
        %1029 = vrot.lane.b32.xlu0 %v961, 57
        %v1030 = vpop.permute.xlu0 %1029
        %1031 = vrot.lane.b32.xlu0 %v962, 57
        %v1032 = vpop.permute.xlu0 %1031
        %v1033 = vsel %vm509, %v1030, %v1032
        %v1034 = vsel %vm509, %v1032, %v1030
        %1035 = vst [vmem:[#allocation2 + $0x30] sm:$0xf] %v1034
        %1036 = vst [vmem:[#allocation2 + $0x38] sm:$0xf] %v1033
        %1037 = vrot.lane.b32.xlu0 %v961, 56
        %v1038 = vpop.permute.xlu0 %1037
        %1039 = vrot.lane.b32.xlu0 %v962, 56
        %v1040 = vpop.permute.xlu0 %1039
        %v1041 = vsel %vm523, %v1038, %v1040
        %v1042 = vsel %vm523, %v1040, %v1038
        %v1045 = vrot.slane %v1042, 4
        %v1046 = vrot.slane %v1041, 4
        %1049 = vst [vmem:[#allocation2 + $0x30] sm:$0xf0] %v1045
        %1050 = vst [vmem:[#allocation2 + $0x38] sm:$0xf0] %v1046
        %1051 = vrot.lane.b32.xlu0 %v961, 55
        %v1052 = vpop.permute.xlu0 %1051
        %1053 = vrot.lane.b32.xlu0 %v962, 55
        %v1054 = vpop.permute.xlu0 %1053
        %v1055 = vsel %vm543, %v1052, %v1054
        %v1056 = vsel %vm543, %v1054, %v1052
        %1057 = vst [vmem:[#allocation2 + $0x40] sm:$0xf] %v1056
        %1058 = vst [vmem:[#allocation2 + $0x48] sm:$0xf] %v1055
        %1059 = vrot.lane.b32.xlu0 %v961, 9
        %v1060 = vpop.permute.xlu0 %1059
        %1061 = vrot.lane.b32.xlu0 %v962, 9
        %v1062 = vpop.permute.xlu0 %1061
        %v1063 = vsel %vm557, %v1060, %v1062
        %v1064 = vsel %vm557, %v1062, %v1060
        %v1067 = vrot.slane %v1064, 4
        %v1068 = vrot.slane %v1063, 4
        %1071 = vst [vmem:[#allocation2 + $0x40] sm:$0xf0] %v1067
        %1072 = vst [vmem:[#allocation2 + $0x48] sm:$0xf0] %v1068
        %1073 = vrot.lane.b32.xlu0 %v961, 8
        %v1074 = vpop.permute.xlu0 %1073
        %1075 = vrot.lane.b32.xlu0 %v962, 8
        %v1076 = vpop.permute.xlu0 %1075
        %v1077 = vsel %vm577, %v1074, %v1076
        %v1078 = vsel %vm577, %v1076, %v1074
        %1079 = vst [vmem:[#allocation2 + $0x50] sm:$0xf] %v1078
        %1080 = vst [vmem:[#allocation2 + $0x58] sm:$0xf] %v1077
        %1081 = vrot.lane.b32.xlu0 %v961, 7
        %v1082 = vpop.permute.xlu0 %1081
        %1083 = vrot.lane.b32.xlu0 %v962, 7
        %v1084 = vpop.permute.xlu0 %1083
        %v1085 = vsel %vm591, %v1082, %v1084
        %v1086 = vsel %vm591, %v1084, %v1082
        %v1089 = vrot.slane %v1086, 4
        %v1090 = vrot.slane %v1085, 4
        %1093 = vst [vmem:[#allocation2 + $0x50] sm:$0xf0] %v1089
        %1094 = vst [vmem:[#allocation2 + $0x58] sm:$0xf0] %v1090
        %1095 = vrot.lane.b32.xlu0 %v961, 1
        %v1096 = vpop.permute.xlu0 %1095
        %1097 = vrot.lane.b32.xlu0 %v962, 1
        %v1098 = vpop.permute.xlu0 %1097
        %v1099 = vsel %vm611, %v1096, %v1098
        %v1100 = vsel %vm611, %v1098, %v1096
        %1101 = vst [vmem:[#allocation2 + $0x60] sm:$0xf] %v1100
        %1102 = vst [vmem:[#allocation2 + $0x68] sm:$0xf] %v1099
        %v1105 = vrot.slane %v961, 4
        %v1106 = vrot.slane %v962, 4
        %1109 = vst [vmem:[#allocation2 + $0x60] sm:$0xf0] %v1105
        %1110 = vst [vmem:[#allocation2 + $0x68] sm:$0xf0] %v1106
        %1111 = vrot.lane.b32.xlu0 %v961, 127
        %v1112 = vpop.permute.xlu0 %1111
        %1113 = vrot.lane.b32.xlu0 %v962, 127
        %v1114 = vpop.permute.xlu0 %1113
        %v1115 = vsel %vm633, %v1112, %v1114
        %v1116 = vsel %vm633, %v1114, %v1112
        %1117 = vst [vmem:[#allocation2 + $0x70] sm:$0xf] %v1115
        %1118 = vst [vmem:[#allocation2 + $0x78] sm:$0xf] %v1116
        %1119 = vrot.lane.b32.xlu0 %v961, 121
        %v1120 = vpop.permute.xlu0 %1119
        %1121 = vrot.lane.b32.xlu0 %v962, 121
        %v1122 = vpop.permute.xlu0 %1121
        %v1123 = vsel %vm647, %v1120, %v1122
        %v1124 = vsel %vm647, %v1122, %v1120
        %v1127 = vrot.slane %v1123, 4
        %v1128 = vrot.slane %v1124, 4
        %1131 = vst [vmem:[#allocation2 + $0x70] sm:$0xf0] %v1127
        %1132 = vst [vmem:[#allocation2 + $0x78] sm:$0xf0] %v1128
        %1133 = vrot.lane.b32.xlu0 %v961, 120
        %v1134 = vpop.permute.xlu0 %1133
        %1135 = vrot.lane.b32.xlu0 %v962, 120
        %v1136 = vpop.permute.xlu0 %1135
        %v1137 = vsel %vm667, %v1134, %v1136
        %v1138 = vsel %vm667, %v1136, %v1134
        %1139 = vst [vmem:[#allocation2 + $0x80] sm:$0xf] %v1137
        %1140 = vst [vmem:[#allocation2 + $0x88] sm:$0xf] %v1138
        %1141 = vrot.lane.b32.xlu0 %v961, 119
        %v1142 = vpop.permute.xlu0 %1141
        %1143 = vrot.lane.b32.xlu0 %v962, 119
        %v1144 = vpop.permute.xlu0 %1143
        %v1145 = vsel %vm681, %v1142, %v1144
        %v1146 = vsel %vm681, %v1144, %v1142
        %v1149 = vrot.slane %v1145, 4
        %v1150 = vrot.slane %v1146, 4
        %1153 = vst [vmem:[#allocation2 + $0x80] sm:$0xf0] %v1149
        %1154 = vst [vmem:[#allocation2 + $0x88] sm:$0xf0] %v1150
        %1155 = vst [vmem:[#allocation2 + $0x90] sm:$0xf] %v967
        %1156 = vst [vmem:[#allocation2 + $0x98] sm:$0xf] %v968
        %1157 = vst [vmem:[#allocation2 + $0x90] sm:$0xf0] %v980
        %1158 = vst [vmem:[#allocation2 + $0x98] sm:$0xf0] %v979
        %1159 = vst [vmem:[#allocation2 + $0xa0] sm:$0xf] %v989
        %1160 = vst [vmem:[#allocation2 + $0xa8] sm:$0xf] %v990
        %1161 = vst [vmem:[#allocation2 + $0xa0] sm:$0xf0] %v1002
        %1162 = vst [vmem:[#allocation2 + $0xa8] sm:$0xf0] %v1001
        %1163 = vst [vmem:[#allocation2 + $0xb0] sm:$0xf] %v1011
        %1164 = vst [vmem:[#allocation2 + $0xb8] sm:$0xf] %v1012
        %1165 = vst [vmem:[#allocation2 + $0xb0] sm:$0xf0] %v1024
        %1166 = vst [vmem:[#allocation2 + $0xb8] sm:$0xf0] %v1023
        %1167 = vst [vmem:[#allocation2 + $0xc0] sm:$0xf] %v1033
        %1168 = vst [vmem:[#allocation2 + $0xc8] sm:$0xf] %v1034
        %1169 = vst [vmem:[#allocation2 + $0xc0] sm:$0xf0] %v1046
        %1170 = vst [vmem:[#allocation2 + $0xc8] sm:$0xf0] %v1045
        %1171 = vst [vmem:[#allocation2 + $0xd0] sm:$0xf] %v1055
        %1172 = vst [vmem:[#allocation2 + $0xd8] sm:$0xf] %v1056
        %v1173 = vld [vmem:[#allocation2] sm:$0xff]
        %v1174 = vld [vmem:[#allocation2 + $0x8] sm:$0xff]
        %v1175 = vld [vmem:[#allocation2 + $0x10] sm:$0xff]
        %v1176 = vld [vmem:[#allocation2 + $0x18] sm:$0xff]
        %v1177 = vld [vmem:[#allocation2 + $0x20] sm:$0xff]
        %v1178 = vld [vmem:[#allocation2 + $0x28] sm:$0xff]
        %v1179 = vld [vmem:[#allocation2 + $0x30] sm:$0xff]
        %v1180 = vld [vmem:[#allocation2 + $0x38] sm:$0xff]
        %v1181 = vld [vmem:[#allocation2 + $0x40] sm:$0xff]
        %v1182 = vld [vmem:[#allocation2 + $0x48] sm:$0xff]
        %v1183 = vld [vmem:[#allocation2 + $0x50] sm:$0xff]
        %v1184 = vld [vmem:[#allocation2 + $0x58] sm:$0xff]
        %v1185 = vld [vmem:[#allocation2 + $0x60] sm:$0xff]
        %v1186 = vld [vmem:[#allocation2 + $0x68] sm:$0xff]
        %v1187 = vld [vmem:[#allocation2 + $0x70] sm:$0xff]
        %v1188 = vld [vmem:[#allocation2 + $0x78] sm:$0xff]
        %v1189 = vld [vmem:[#allocation2 + $0x80] sm:$0xff]
        %v1190 = vld [vmem:[#allocation2 + $0x88] sm:$0xff]
        %v1191 = vld [vmem:[#allocation2 + $0x90] sm:$0xff]
        %v1192 = vld [vmem:[#allocation2 + $0x98] sm:$0xff]
        %v1193 = vld [vmem:[#allocation2 + $0xa0] sm:$0xff]
        %v1194 = vld [vmem:[#allocation2 + $0xa8] sm:$0xff]
        %v1195 = vld [vmem:[#allocation2 + $0xb0] sm:$0xff]
        %v1196 = vld [vmem:[#allocation2 + $0xb8] sm:$0xff]
        %v1197 = vld [vmem:[#allocation2 + $0xc0] sm:$0xff]
        %v1198 = vld [vmem:[#allocation2 + $0xc8] sm:$0xff]
        %v1199 = vld [vmem:[#allocation2 + $0xd0] sm:$0xf]
        %v1200 = vld [vmem:[#allocation2 + $0xd8] sm:$0xf]
        %v1201 = vmul.f32 %v1173, %v342
        %v1202 = vmul.f32 %v1174, %v343
        %v1203 = vmul.f32 %v1175, %v344
        %v1204 = vmul.f32 %v1176, %v345
        %v1205 = vmul.f32 %v1177, %v346
        %v1206 = vmul.f32 %v1178, %v347
        %v1207 = vmul.f32 %v1179, %v348
        %v1208 = vmul.f32 %v1180, %v349
        %v1209 = vmul.f32 %v1181, %v350
        %v1210 = vmul.f32 %v1182, %v351
        %v1211 = vmul.f32 %v1183, %v352
        %v1212 = vmul.f32 %v1184, %v353
        %v1213 = vmul.f32 %v1185, %v354
        %v1214 = vmul.f32 %v1186, %v355
        %v1215 = vmul.f32 %v1187, %v356
        %v1216 = vmul.f32 %v1188, %v357
        %v1217 = vmul.f32 %v1189, %v358
        %v1218 = vmul.f32 %v1190, %v359
        %v1219 = vmul.f32 %v1191, %v360
        %v1220 = vmul.f32 %v1192, %v361
        %v1221 = vmul.f32 %v1193, %v362
        %v1222 = vmul.f32 %v1194, %v363
        %v1223 = vmul.f32 %v1195, %v364
        %v1224 = vmul.f32 %v1196, %v365
        %v1225 = vmul.f32 %v1197, %v366
        %v1226 = vmul.f32 %v1198, %v367
        %v1227 = vmul.f32 %v1199, %v368
        %v1228 = vmul.f32 %v1200, %v369
        %v1229 = vld [vmem:[%s6] sm:$0xf]
        %1231 = vst [vmem:[#allocation1] ss:$2 sm:$0xff] %v341
        %v1232 = vld.sshfl [vmem:[#allocation1] sm:$0xff pattern:$0x75316420]
        %v1233 = vld.sshfl [vmem:[#allocation1 + $0x8] sm:$0xff pattern:$0x75316420]
        %v1237 = vsel %vm890, %v1229, 0
        %v1240 = vsel %vm894, %v1227, 0
        %v1243 = vsel %vm894, %v1228, 0
        %1245 = vmatpush.msra.mxu0 0.0
        %1246 = vmatpush.msra.mxu0 0.0
        %1247 = vmatpush.msra.mxu0 %v1240
        %1248 = vmatpush.msra.mxu0 %v1225
        %1249 = vmatpush.msra.mxu0 %v1223
        %1250 = vmatpush.msra.mxu0 %v1221
        %1251 = vmatpush.msra.mxu0 %v1219
        %1252 = vmatpush.msra.mxu0 %v1217
        %1253 = vmatpush.msra.mxu0 %v1215
        %1254 = vmatpush.msra.mxu0 %v1213
        %1255 = vmatpush.msra.mxu0 %v1211
        %1256 = vmatpush.msra.mxu0 %v1209
        %1257 = vmatpush.msra.mxu0 %v1207
        %1258 = vmatpush.msra.mxu0 %v1205
        %1259 = vmatpush.msra.mxu0 %v1203
        %1260 = vmatpush.msra.mxu0 %v1201
        %1261 = vmatmul.f32.gmra.mxu0 %v1237
        %v1262 = vpop.f32.mrf.mxu0
        %v1263 = vadd.f32 %v1232, %v1262
        %1264 = vdwg.mxu0
        %1265 = vmatpush.msra.mxu0 0.0
        %1266 = vmatpush.msra.mxu0 0.0
        %1267 = vmatpush.msra.mxu0 %v1243
        %1268 = vmatpush.msra.mxu0 %v1226
        %1269 = vmatpush.msra.mxu0 %v1224
        %1270 = vmatpush.msra.mxu0 %v1222
        %1271 = vmatpush.msra.mxu0 %v1220
        %1272 = vmatpush.msra.mxu0 %v1218
        %1273 = vmatpush.msra.mxu0 %v1216
        %1274 = vmatpush.msra.mxu0 %v1214
        %1275 = vmatpush.msra.mxu0 %v1212
        %1276 = vmatpush.msra.mxu0 %v1210
        %1277 = vmatpush.msra.mxu0 %v1208
        %1278 = vmatpush.msra.mxu0 %v1206
        %1279 = vmatpush.msra.mxu0 %v1204
        %1280 = vmatpush.msra.mxu0 %v1202
        %1281 = vmatmul.f32.gmra.mxu0 %v1237
        %v1282 = vpop.f32.mrf.mxu0
        %v1283 = vadd.f32 %v1233, %v1282
        %1284 = vdwg.mxu0
        %v1287 = vrot.slane %v1283, 4
        %v1288 = vsel %vm894, %v1263, %v1287
        %1290 = vst [vmem:[%s340] sm:$0xff] %v1288
        %s1291 = sand.u32 %s207, 1
        %s1292 = scalar_lea.sflag [#allocation5], %s1291
        %s1293 = sand.u32 %s207, 1
        %s1294 = smul.addr %s1293, 8
        %s1295 = scalar_lea.vmem [#allocation8], %s1294
        // Predicated region
        $region61: #{tpu_custom_call.1} parent=51 // pred_check
          %p1296 = pneg %p217
        $region62: #{tpu_custom_call.1} parent=51 // pred_check_branch
          %1298 = sbr.rel (%p1296) target = $region64
        $region63: #{tpu_custom_call.1} parent=51 // pred_region
          %1300 = vsyncadd %s1292, 0
          %s1301 = smul.addr %s26, 2
          %s1302 = smul.addr %s1301, 4
          %s1303 = scalar_lea.hbm %s8, %s1302
          %s1305 = sshll.u32 %s1295, 4
          %s1306 = int_to_ptr.vmem [resolvable:$true] %s1305
          %s1307 = sshll.u32 %s1303, 4
          %s1308 = int_to_ptr.hbm [resolvable:$true] %s1307
          %1310 = dma.vmem_to_hbm [thread:$0]  %s1306, 128, %s1308, %s1292
        $region64: #{tpu_custom_call.1} parent=51 // pred_fallthru
          _
      $region52: #{tpu_custom_call.1} parent=5 // pred_fallthru
        _
      %p1311 = scmp.le.s32.totalorder 2, %s21
      // Predicated region
      $region65: #{tpu_custom_call.1} parent=5 // pred_check
        %p1312 = pneg %p1311
      $region66: #{tpu_custom_call.1} parent=5 // pred_check_branch
        %1314 = sbr.rel (%p1312) target = $region68
      $region67: #{tpu_custom_call.1} parent=5 // pred_region
        %s1315 = ssub.s32 %s21, 2
        // Predicated region
        $region69: #{tpu_custom_call.1} parent=67 // pred_check
          %p1316 = pneg %p223
        $region70: #{tpu_custom_call.1} parent=67 // pred_check_branch
          %1318 = sbr.rel (%p1316) target = $region72
        $region71: #{tpu_custom_call.1} parent=67 // pred_region
          %s1319 = sand.u32 %s208, 1
          %s1320 = scalar_lea.sflag [#allocation5], %s1319
          %s1321 = sand.u32 %s208, 1
          %s1322 = smul.addr %s1321, 8
          %s1323 = scalar_lea.vmem [#allocation8], %s1322
          %1325 = dma.done %s1320, 128
        $region72: #{tpu_custom_call.1} parent=67 // pred_fallthru
          _
      $region68: #{tpu_custom_call.1} parent=5 // pred_fallthru
        _
    $region6: #{tpu_custom_call.1} parent=1 // loop_footer
      %s25 = sadd.s32 1, %s21
    $region7: #{tpu_custom_call.1} parent=1 // loop_footer_branch
      %20 = sbr.rel target = $region3
    $region8: #{tpu_custom_call.1} parent=1 // loop_exit
      _
    %1326 = vsyncpa [#allocation4], 1
    %s1327 = scalar_lea.sflag [#allocation4], 1
    %1328 = vsyncpa %s1327, 1
    %1329 = vsyncpa [#allocation7], 1
    %1330 = vsyncpa [#allocation5], 1
    %s1331 = scalar_lea.sflag [#allocation5], 1
    %1332 = vsyncpa %s1331, 1

</llo_original>
